<compile_context>
chip_gen: v7x
topology: tpu7x:2x2x1
jax: 0.10.0
libtpu: 0.0.40
codegen_flags: <defaults>
</compile_context>

<pallas_src>
import functools
import math

import jax
import jax.numpy as jnp
from jax import lax
from jax.experimental import pallas as pl
from jax.experimental.pallas import tpu as pltpu

# ---------------- module configuration (small, consistent with the module) ---
HIDDEN = 32
NUM_HEADS = 4
HEAD_DIM = HIDDEN // NUM_HEADS            # 8
REDUCTION = 4
RED_HEADS = NUM_HEADS // REDUCTION        # 1 (single shared K/V head == torch .repeat)
WINDOW = 4                                # window_size (< S so both branches differ)
LN_EPS = 1e-5

_W_COLS = HIDDEN + 2 * (HIDDEN // REDUCTION) + 1   # [ q | k | v | gate ] = 49


def _is_pow2(n: int) -> bool:
    return n > 0 and (n & (n - 1)) == 0


def _idiv(x, n: int):
    """Integer divide of a non-negative int32 tensor by a static constant."""
    if _is_pow2(n):
        return x >> (n.bit_length() - 1)
    return x // n


def _imod(x, n: int):
    if _is_pow2(n):
        return x & (n - 1)
    return x % n


def _tensorcores_per_device() -> int:
    """Best-effort TC-per-device count; only affects the grid split (perf)."""
    try:
        kind = jax.devices()[0].device_kind.lower()
    except Exception:
        return 1
    if any(tag in kind for tag in ("v4", "v5p", "v7", "7x")):
        return 2
    return 1


# ----------------------------- fused Pallas kernel ---------------------------
def _fused_forward_kernel(x_ref, w_all_ref, wo_ref, gc_ref, o_ref, reg_ref, *,
                          num_heads, head_dim, window_size, seq_len, inv_total):
    R = x_ref.shape[0]                     # rows in this grid step = B_BLK * S
    D = head_dim
    H = num_heads * D
    S = seq_len
    b_blk = R // S
    C = num_heads * R                      # score columns, ordered c = h*R + (b*S + j)

    x = x_ref[...]                                              # (R, H)

    # LayerNorm row statistics (only needed for the folded gate column).
    mu = jnp.mean(x, axis=-1, keepdims=True)                    # (R, 1)
    var = jnp.mean((x - mu) ** 2, axis=-1, keepdims=True)
    r = lax.rsqrt(var + LN_EPS)                                 # (R, 1)

    # Single fused projection matmul: columns = [ q | k | v | gamma*gate_w ].
    proj = jnp.dot(x, w_all_ref[...], preferred_element_type=jnp.float32)   # (R, 49)
    q = proj[:, :H]                                             # (R, H)
    k = proj[:, H:H + D]                                        # (R, D) shared reduced head
    v = proj[:, H + D:H + 2 * D]                                # (R, D)
    g_col = proj[:, H + 2 * D:H + 2 * D + 1]                    # (R, 1)

    # Folded LayerNorm + gate proj: z = r*(x@(gamma*w) - mu*sum(gamma*w)) + (beta.w + b)
    gc = gc_ref[...]                                            # (1, 2)
    z = r * (g_col - mu * gc[:, 0:1]) + gc[:, 1:2]
    g = jax.nn.sigmoid(jnp.clip(z, -10.0, 10.0))                # (R, 1) per-query gate

    # ---- heads-on-lanes block-diagonal K / V --------------------------------
    # K_bd[h*R + rk, h'*D + d] = k[rk, d] iff h == h'   (same for V_bd with v).
    rk_i = lax.broadcasted_iota(jnp.int32, (C, H), 0)
    cc_i = lax.broadcasted_iota(jnp.int32, (C, H), 1)
    head_diag = _idiv(rk_i, R) == _idiv(cc_i, D)                # (C, H) block mask
    k_lanes = jnp.concatenate([k] * num_heads, axis=1)          # (R, H)  == tile on lanes
    v_lanes = jnp.concatenate([v] * num_heads, axis=1)
    k_full = jnp.concatenate([k_lanes] * num_heads, axis=0)     # (C, H)  == tile on sublanes
    v_full = jnp.concatenate([v_lanes] * num_heads, axis=0)
    k_bd = jnp.where(head_diag, k_full, 0.0)
    v_bd = jnp.where(head_diag, v_full, 0.0)

    # ---- all heads / all batches in ONE score matmul ------------------------
    scores = jnp.einsum("im,cm->ic", q, k_bd,
                        preferred_element_type=jnp.float32)     # (R, C)
    scores = scores * (1.0 / math.sqrt(D))   # kept explicit (see header note)

    # Masks built directly at (R, C): column c -> head = c//R, batch = (c//S)%b_blk,
    # key pos = c%S ; row rq -> batch = rq//S, query pos = rq%S.
    ri = lax.broadcasted_iota(jnp.int32, (R, C), 0)
    ci = lax.broadcasted_iota(jnp.int32, (R, C), 1)
    qi = _imod(ri, S)
    qb = _idiv(ri, S)
    kj = _imod(ci, S)
    kb = _imod(_idiv(ci, S), b_blk)
    same_b = qb == kb
    half = window_size // 2
    causal_ok = same_b & (kj <= qi)
    # NOTE: local window intentionally attends to future tokens inside the
    # window (matches the PyTorch mask, which is NOT intersected with causal).
    local_ok = same_b & (kj >= qi - half) & (kj <= qi + half)

    # Per-branch masked max (robust: masked entries underflow to exactly 0 and
    # the diagonal is always allowed in both branches, so denominators > 0).
    neg = jnp.float32(-1e30)
    s_c = jnp.where(causal_ok, scores, neg)
    s_l = jnp.where(local_ok, scores, neg)
    m_c = jnp.max(s_c, axis=-1, keepdims=True)
    m_l = jnp.max(s_l, axis=-1, keepdims=True)
    e_c = jnp.exp(s_c - m_c)
    e_l = jnp.exp(s_l - m_l)

    # Per-(row, head) softmax denominators broadcast back to (R, C) with one
    # MXU matmul against a block-constant ones matrix (no lane reshapes).
    bo_r = lax.broadcasted_iota(jnp.int32, (C, C), 0)
    bo_c = lax.broadcasted_iota(jnp.int32, (C, C), 1)
    blk_ones = (_idiv(bo_r, R) == _idiv(bo_c, R)).astype(jnp.float32)   # (C, C)
    den_c = jnp.dot(e_c, blk_ones, preferred_element_type=jnp.float32,
                    precision=lax.Precision.HIGHEST)
    den_l = jnp.dot(e_l, blk_ones, preferred_element_type=jnp.float32,
                    precision=lax.Precision.HIGHEST)
    p_c = e_c * pl.reciprocal(den_c, approx=False)
    p_l = e_l * pl.reciprocal(den_l, approx=False)

    attn = g * p_l + (1.0 - g) * p_c                            # (R, C)

    # attn @ V_bd lands directly in head-major (R, H) layout (== torch
    # transpose(1,2).reshape), so no output re-concat is needed.
    ctx = jnp.dot(attn, v_bd, preferred_element_type=jnp.float32)        # (R, H)
    out = jnp.dot(ctx, wo_ref[...], preferred_element_type=jnp.float32)  # (R, H)
    o_ref[...] = out.astype(o_ref.dtype)                        # lane-dense slab store

    # ---- gate regularization partial, fully reduced in-kernel ---------------
    eps = 1e-5
    g_st = jnp.clip(g, eps, 1.0 - eps)
    s_bin = jnp.sum(g * (1.0 - g), axis=0, keepdims=True)
    s_ent = jnp.sum(g * jnp.log(g_st) + (1.0 - g) * jnp.log(1.0 - g_st),
                    axis=0, keepdims=True)
    s_g = jnp.sum(g, axis=0, keepdims=True)
    # NOTE: inv_total is a baked Python float (1/(B*S)); changing B or S
    # retraces/recompiles (not a numerical issue).
    reg_ref[0] = (-0.1 * s_bin - 0.01 * s_ent + 0.1 * s_g) * inv_total   # (1, 1)


# ----------------------------- full forward ----------------------------------
def gated_duo_attention_forward(params, hidden_states):
    B, S, H = hidden_states.shape
    assert H == HIDDEN and RED_HEADS == 1
    assert _is_pow2(S) and _is_pow2(HEAD_DIM)

    # Generation-aware batch folding: 1 grid step on 1-TC chips (v5e/v6e),
    # 2 steps on 2-TC chips (v4/v5p/v7x) so dimension_semantics can split them.
    n_tc = _tensorcores_per_device()
    n_steps = n_tc if (n_tc <= B and B % n_tc == 0) else 1
    b_blk = B // n_steps
    rows = b_blk * S

    gamma = params["ln_gamma"].reshape(H)
    beta = params["ln_beta"].reshape(H)
    gw = params["gate_w"].reshape(H)

    # Fused projection weight: [ wq | wk | wv | gamma*gate_w ]  (H, 49).
    w_all = jnp.concatenate(
        [params["wq"], params["wk"], params["wv"], (gamma * gw).reshape(H, 1)],
        axis=1)
    gate_consts = jnp.stack(
        [jnp.sum(gamma * gw),
         jnp.sum(beta * gw) + params["gate_b"].reshape(())]).reshape(1, 2)

    x2 = hidden_states.reshape(B * S, H)        # free row-major reshape in HBM

    kernel = functools.partial(
        _fused_forward_kernel,
        num_heads=NUM_HEADS, head_dim=HEAD_DIM, window_size=WINDOW,
        seq_len=S, inv_total=1.0 / float(B * S))

    out2, reg_part = pl.pallas_call(
        kernel,
        out_shape=(jax.ShapeDtypeStruct((B * S, H), jnp.float32),
                   jax.ShapeDtypeStruct((n_steps, 1, 1), jnp.float32)),
        grid=(n_steps,),
        in_specs=[
            pl.BlockSpec((rows, H), lambda g: (g, 0)),           # hidden states rows
            pl.BlockSpec((H, _W_COLS), lambda g: (0, 0)),        # fused qkv+gate weight
            pl.BlockSpec((H, H), lambda g: (0, 0)),              # wo
            pl.BlockSpec((1, 2), lambda g: (0, 0)),              # folded gate constants
        ],
        out_specs=(
            pl.BlockSpec((rows, H), lambda g: (g, 0)),
            pl.BlockSpec((1, 1, 1), lambda g: (g, 0, 0)),
        ),
        compiler_params=pltpu.CompilerParams(dimension_semantics=("parallel",)),
    )(x2, w_all, params["wo"], gate_consts)

    reg_loss = jnp.sum(reg_part)           # tiny combine of per-core partials
    return out2.reshape(B, S, H), reg_loss


# ----------------------------- pure-JAX reference ----------------------------
def reference_forward(params, hidden_states):
    B, S, H = hidden_states.shape
    x = hidden_states

    mu = jnp.mean(x, axis=-1, keepdims=True)
    var = jnp.mean((x - mu) ** 2, axis=-1, keepdims=True)
    gi = (x - mu) / jnp.sqrt(var + LN_EPS) * params["ln_gamma"][0] + params["ln_beta"][0]
    gates = jax.nn.sigmoid(
        jnp.clip(gi @ params["gate_w"] + params["gate_b"][0, 0], -10.0, 10.0))   # (B,S,1)

    q = (x.reshape(B * S, H) @ params["wq"]).reshape(B, S, NUM_HEADS, HEAD_DIM)
    k = (x.reshape(B * S, H) @ params["wk"]).reshape(B, S, RED_HEADS, HEAD_DIM)
    v = (x.reshape(B * S, H) @ params["wv"]).reshape(B, S, RED_HEADS, HEAD_DIM)
    q = q.transpose(0, 2, 1, 3)
    k = jnp.tile(k.transpose(0, 2, 1, 3), (1, REDUCTION, 1, 1))
    v = jnp.tile(v.transpose(0, 2, 1, 3), (1, REDUCTION, 1, 1))

    scores = jnp.einsum("bhqd,bhkd->bhqk", q, k) / math.sqrt(HEAD_DIM)
    row = jnp.arange(S)[:, None]
    col = jnp.arange(S)[None, :]
    causal = jnp.where(col > row, -jnp.inf, 0.0)
    half = WINDOW // 2
    local = jnp.where((col >= row - half) & (col <= row + half), 0.0, -jnp.inf)

    local_p = jax.nn.softmax(scores + local, axis=-1)
    global_p = jax.nn.softmax(scores + causal, axis=-1)
    gexp = gates[:, None, :, :]                       # (B, 1, S, 1)
    attn = gexp * local_p + (1.0 - gexp) * global_p
    out = jnp.einsum("bhqk,bhkd->bhqd", attn, v)
    out = out.transpose(0, 2, 1, 3).reshape(B, S, H) @ params["wo"]

    eps = 1e-5
    gc = jnp.clip(gates, eps, 1.0 - eps)
    reg = (
        -0.1 * jnp.mean(gates * (1.0 - gates))
        - 0.01 * jnp.mean(gates * jnp.log(gc) + (1.0 - gates) * jnp.log(1.0 - gc))
        + 0.1 * jnp.mean(gates)
    )
    return out, reg


# ----------------------------- main -------------------------------------------
if __name__ == "__main__":
    key = jax.random.PRNGKey(0)
    ks = jax.random.split(key, 8)
    B, S = 2, 8

    hidden_states = jax.random.normal(ks[0], (B, S, HIDDEN), jnp.float32)
    params = {
        "wq": 0.05 * jax.random.normal(ks[1], (HIDDEN, HIDDEN), jnp.float32),
        "wk": 0.05 * jax.random.normal(ks[2], (HIDDEN, HIDDEN // REDUCTION), jnp.float32),
        "wv": 0.05 * jax.random.normal(ks[3], (HIDDEN, HIDDEN // REDUCTION), jnp.float32),
        "wo": 0.05 * jax.random.normal(ks[4], (HIDDEN, HIDDEN), jnp.float32),
        "gate_w": 0.1 * jax.random.normal(ks[5], (HIDDEN, 1), jnp.float32),
        "gate_b": 0.1 * jax.random.normal(ks[6], (1, 1), jnp.float32),
        "ln_gamma": jnp.ones((1, HIDDEN), jnp.float32),   # PyTorch LayerNorm default init
        "ln_beta": jnp.zeros((1, HIDDEN), jnp.float32),
    }

    out, reg_loss = jax.jit(gated_duo_attention_forward)(params, hidden_states)
    jax.block_until_ready((out, reg_loss))

    ref_out, ref_reg = reference_forward(params, hidden_states)
    assert out.shape == (B, S, HIDDEN)
    assert jnp.allclose(out, ref_out, atol=1e-5, rtol=1e-5), "attention output mismatch"
    assert jnp.allclose(reg_loss, ref_reg, atol=1e-6), "reg loss mismatch"

    print("KERNEL_OK")
</pallas_src>

<mosaic_0001>
module attributes {stable_mosaic.version = 11 : i64} {
  func.func @_fused_forward_kernel(%arg0: i32, %arg1: memref<16x32xf32, #tpu.memory_space<vmem>>, %arg2: memref<32x49xf32, #tpu.memory_space<vmem>>, %arg3: memref<32x32xf32, #tpu.memory_space<vmem>>, %arg4: memref<1x2xf32, #tpu.memory_space<vmem>>, %arg5: memref<16x32xf32, #tpu.memory_space<vmem>>, %arg6: memref<1x1x1xf32, #tpu.memory_space<vmem>>) attributes {dimension_semantics = [#tpu.dimension_semantics<parallel>], iteration_bounds = array<i64: 1>, scalar_prefetch = 0 : i64, scratch_operands = 0 : i64, tpu.core_type = #tpu.core_type<tc>, window_params = [{transform_indices = @transform_0, window_bounds = array<i64: 16, 32>}, {pipeline_mode = #tpu.pipeline_mode<synchronous>, transform_indices = @transform_1, window_bounds = array<i64: 32, 49>}, {pipeline_mode = #tpu.pipeline_mode<synchronous>, transform_indices = @transform_2, window_bounds = array<i64: 32, 32>}, {pipeline_mode = #tpu.pipeline_mode<synchronous>, transform_indices = @transform_3, window_bounds = array<i64: 1, 2>}, {transform_indices = @transform_4, window_bounds = array<i64: 16, 32>}, {transform_indices = @transform_5, window_bounds = array<i64: 1, 1, 1>}]} {
    %c0 = arith.constant 0 : index
    %c0_0 = arith.constant 0 : index
    %0 = vector.load %arg1[%c0, %c0_0] : memref<16x32xf32, #tpu.memory_space<vmem>>, vector<16x32xf32>
    %cst = arith.constant dense<0.000000e+00> : vector<16xf32>
    %1 = vector.multi_reduction <add>, %0, %cst [1] : vector<16x32xf32> to vector<16xf32>
    %2 = vector.shape_cast %1 : vector<16xf32> to vector<16x1xf32>
    %cst_1 = arith.constant 3.200000e+01 : f32
    %3 = vector.broadcast %cst_1 : f32 to vector<16x1xf32>
    %4 = arith.divf %2, %3 : vector<16x1xf32>
    %5 = vector.broadcast %4 : vector<16x1xf32> to vector<16x32xf32>
    %6 = arith.subf %0, %5 : vector<16x32xf32>
    %7 = arith.mulf %6, %6 : vector<16x32xf32>
    %cst_2 = arith.constant dense<0.000000e+00> : vector<16xf32>
    %8 = vector.multi_reduction <add>, %7, %cst_2 [1] : vector<16x32xf32> to vector<16xf32>
    %9 = vector.shape_cast %8 : vector<16xf32> to vector<16x1xf32>
    %cst_3 = arith.constant 3.200000e+01 : f32
    %10 = vector.broadcast %cst_3 : f32 to vector<16x1xf32>
    %11 = arith.divf %9, %10 : vector<16x1xf32>
    %cst_4 = arith.constant 9.99999974E-6 : f32
    %12 = vector.broadcast %cst_4 : f32 to vector<16x1xf32>
    %13 = arith.addf %11, %12 : vector<16x1xf32>
    %14 = math.rsqrt %13 : vector<16x1xf32>
    %c0_5 = arith.constant 0 : index
    %c0_6 = arith.constant 0 : index
    %15 = vector.load %arg2[%c0_5, %c0_6] : memref<32x49xf32, #tpu.memory_space<vmem>>, vector<32x49xf32>
    %cst_7 = arith.constant dense<0.000000e+00> : vector<16x49xf32>
    %16 = tpu.matmul %0, %15, %cst_7 {dimension_numbers = #tpu.dot_dimension_numbers<[1], [0], [0], [1], [0, 0, 1, 1], [], []>} : vector<16x32xf32>, vector<32x49xf32>, vector<16x49xf32> -> vector<16x49xf32>
    %17 = vector.extract_strided_slice %16 {offsets = [0, 0], sizes = [16, 32], strides = [1, 1]} : vector<16x49xf32> to vector<16x32xf32>
    %18 = vector.extract_strided_slice %16 {offsets = [0, 32], sizes = [16, 8], strides = [1, 1]} : vector<16x49xf32> to vector<16x8xf32>
    %19 = vector.extract_strided_slice %16 {offsets = [0, 40], sizes = [16, 8], strides = [1, 1]} : vector<16x49xf32> to vector<16x8xf32>
    %20 = vector.extract_strided_slice %16 {offsets = [0, 48], sizes = [16, 1], strides = [1, 1]} : vector<16x49xf32> to vector<16x1xf32>
    %c0_8 = arith.constant 0 : index
    %c0_9 = arith.constant 0 : index
    %21 = vector.load %arg4[%c0_8, %c0_9] : memref<1x2xf32, #tpu.memory_space<vmem>>, vector<1x2xf32>
    %22 = vector.extract_strided_slice %21 {offsets = [0, 0], sizes = [1, 1], strides = [1, 1]} : vector<1x2xf32> to vector<1x1xf32>
    %23 = vector.broadcast %22 : vector<1x1xf32> to vector<16x1xf32>
    %24 = arith.mulf %4, %23 : vector<16x1xf32>
    %25 = arith.subf %20, %24 : vector<16x1xf32>
    %26 = arith.mulf %14, %25 : vector<16x1xf32>
    %27 = vector.extract_strided_slice %21 {offsets = [0, 1], sizes = [1, 1], strides = [1, 1]} : vector<1x2xf32> to vector<1x1xf32>
    %28 = vector.broadcast %27 : vector<1x1xf32> to vector<16x1xf32>
    %29 = arith.addf %26, %28 : vector<16x1xf32>
    %cst_10 = arith.constant -1.000000e+01 : f32
    %cst_11 = arith.constant 1.000000e+01 : f32
    %30 = vector.broadcast %cst_10 : f32 to vector<16x1xf32>
    %31 = arith.maximumf %30, %29 : vector<16x1xf32>
    %32 = vector.broadcast %cst_11 : f32 to vector<16x1xf32>
    %33 = arith.minimumf %32, %31 : vector<16x1xf32>
    %34 = arith.negf %33 : vector<16x1xf32>
    %35 = math.exp %34 : vector<16x1xf32>
    %cst_12 = arith.constant 1.000000e+00 : f32
    %36 = vector.broadcast %cst_12 : f32 to vector<16x1xf32>
    %37 = arith.addf %36, %35 : vector<16x1xf32>
    %38 = arith.divf %36, %37 : vector<16x1xf32>
    %39 = tpu.iota {dimensions = array<i32: 0>} : vector<64x32xi32>
    %40 = tpu.iota {dimensions = array<i32: 1>} : vector<64x32xi32>
    %c4_i32 = arith.constant 4 : i32
    %41 = vector.broadcast %c4_i32 : i32 to vector<64x32xi32>
    %42 = arith.shrsi %39, %41 : vector<64x32xi32>
    %c3_i32 = arith.constant 3 : i32
    %43 = vector.broadcast %c3_i32 : i32 to vector<64x32xi32>
    %44 = arith.shrsi %40, %43 : vector<64x32xi32>
    %45 = arith.cmpi eq, %42, %44 : vector<64x32xi32>
    %46 = tpu.concatenate %18, %18, %18, %18 in 1 : vector<16x8xf32>, vector<16x8xf32>, vector<16x8xf32>, vector<16x8xf32> -> vector<16x32xf32>
    %47 = tpu.concatenate %19, %19, %19, %19 in 1 : vector<16x8xf32>, vector<16x8xf32>, vector<16x8xf32>, vector<16x8xf32> -> vector<16x32xf32>
    %48 = tpu.concatenate %46, %46, %46, %46 in 0 : vector<16x32xf32>, vector<16x32xf32>, vector<16x32xf32>, vector<16x32xf32> -> vector<64x32xf32>
    %49 = tpu.concatenate %47, %47, %47, %47 in 0 : vector<16x32xf32>, vector<16x32xf32>, vector<16x32xf32>, vector<16x32xf32> -> vector<64x32xf32>
    %cst_13 = arith.constant 0.000000e+00 : f32
    %50 = vector.broadcast %cst_13 : f32 to vector<64x32xf32>
    %51 = arith.select %45, %48, %50 : vector<64x32xi1>, vector<64x32xf32>
    %cst_14 = arith.constant 0.000000e+00 : f32
    %52 = vector.broadcast %cst_14 : f32 to vector<64x32xf32>
    %53 = arith.select %45, %49, %52 : vector<64x32xi1>, vector<64x32xf32>
    "tpu.trace_start"() <{level = 10 : i32, message = "im,cm->ic"}> : () -> ()
    %cst_15 = arith.constant dense<0.000000e+00> : vector<16x64xf32>
    %54 = tpu.matmul %17, %51, %cst_15 {dimension_numbers = #tpu.dot_dimension_numbers<[1], [1], [0], [0], [0, 0, 1, 0], [], []>} : vector<16x32xf32>, vector<64x32xf32>, vector<16x64xf32> -> vector<16x64xf32>
    "tpu.trace_stop"() : () -> ()
    %cst_16 = arith.constant 0.353553385 : f32
    %55 = vector.broadcast %cst_16 : f32 to vector<16x64xf32>
    %56 = arith.mulf %54, %55 : vector<16x64xf32>
    %57 = tpu.iota {dimensions = array<i32: 0>} : vector<16x64xi32>
    %58 = tpu.iota {dimensions = array<i32: 1>} : vector<16x64xi32>
    %c7_i32 = arith.constant 7 : i32
    %59 = vector.broadcast %c7_i32 : i32 to vector<16x64xi32>
    %60 = arith.andi %57, %59 : vector<16x64xi32>
    %c3_i32_17 = arith.constant 3 : i32
    %61 = vector.broadcast %c3_i32_17 : i32 to vector<16x64xi32>
    %62 = arith.shrsi %57, %61 : vector<16x64xi32>
    %c7_i32_18 = arith.constant 7 : i32
    %63 = vector.broadcast %c7_i32_18 : i32 to vector<16x64xi32>
    %64 = arith.andi %58, %63 : vector<16x64xi32>
    %c3_i32_19 = arith.constant 3 : i32
    %65 = vector.broadcast %c3_i32_19 : i32 to vector<16x64xi32>
    %66 = arith.shrsi %58, %65 : vector<16x64xi32>
    %c1_i32 = arith.constant 1 : i32
    %67 = vector.broadcast %c1_i32 : i32 to vector<16x64xi32>
    %68 = arith.andi %66, %67 : vector<16x64xi32>
    %69 = arith.cmpi eq, %62, %68 : vector<16x64xi32>
    %70 = arith.cmpi sle, %64, %60 : vector<16x64xi32>
    %71 = arith.andi %69, %70 : vector<16x64xi1>
    %c2_i32 = arith.constant 2 : i32
    %72 = vector.broadcast %c2_i32 : i32 to vector<16x64xi32>
    %73 = arith.subi %60, %72 : vector<16x64xi32>
    %74 = arith.cmpi sge, %64, %73 : vector<16x64xi32>
    %75 = arith.andi %69, %74 : vector<16x64xi1>
    %c2_i32_20 = arith.constant 2 : i32
    %76 = vector.broadcast %c2_i32_20 : i32 to vector<16x64xi32>
    %77 = arith.addi %60, %76 : vector<16x64xi32>
    %78 = arith.cmpi sle, %64, %77 : vector<16x64xi32>
    %79 = arith.andi %75, %78 : vector<16x64xi1>
    %cst_21 = arith.constant -1.000000e+30 : f32
    %80 = vector.broadcast %cst_21 : f32 to vector<16x64xf32>
    %81 = arith.select %71, %56, %80 : vector<16x64xi1>, vector<16x64xf32>
    %cst_22 = arith.constant -1.000000e+30 : f32
    %82 = vector.broadcast %cst_22 : f32 to vector<16x64xf32>
    %83 = arith.select %79, %56, %82 : vector<16x64xi1>, vector<16x64xf32>
    %cst_23 = arith.constant dense<0xFF800000> : vector<16xf32>
    %84 = vector.multi_reduction <maximumf>, %81, %cst_23 [1] : vector<16x64xf32> to vector<16xf32>
    %85 = vector.shape_cast %84 : vector<16xf32> to vector<16x1xf32>
    %cst_24 = arith.constant dense<0xFF800000> : vector<16xf32>
    %86 = vector.multi_reduction <maximumf>, %83, %cst_24 [1] : vector<16x64xf32> to vector<16xf32>
    %87 = vector.shape_cast %86 : vector<16xf32> to vector<16x1xf32>
    %88 = vector.broadcast %85 : vector<16x1xf32> to vector<16x64xf32>
    %89 = arith.subf %81, %88 : vector<16x64xf32>
    %90 = math.exp %89 : vector<16x64xf32>
    %91 = vector.broadcast %87 : vector<16x1xf32> to vector<16x64xf32>
    %92 = arith.subf %83, %91 : vector<16x64xf32>
    %93 = math.exp %92 : vector<16x64xf32>
    %94 = tpu.iota {dimensions = array<i32: 0>} : vector<64x64xi32>
    %95 = tpu.iota {dimensions = array<i32: 1>} : vector<64x64xi32>
    %c4_i32_25 = arith.constant 4 : i32
    %96 = vector.broadcast %c4_i32_25 : i32 to vector<64x64xi32>
    %97 = arith.shrsi %94, %96 : vector<64x64xi32>
    %c4_i32_26 = arith.constant 4 : i32
    %98 = vector.broadcast %c4_i32_26 : i32 to vector<64x64xi32>
    %99 = arith.shrsi %95, %98 : vector<64x64xi32>
    %100 = arith.cmpi eq, %97, %99 : vector<64x64xi32>
    %101 = arith.extui %100 : vector<64x64xi1> to vector<64x64xi32>
    %102 = arith.sitofp %101 : vector<64x64xi32> to vector<64x64xf32>
    %cst_27 = arith.constant dense<0.000000e+00> : vector<16x64xf32>
    %103 = tpu.matmul %90, %102, %cst_27 {dimension_numbers = #tpu.dot_dimension_numbers<[1], [0], [0], [1], [0, 0, 1, 1], [], []>, precision = #tpu.contract_precision<fp32>} : vector<16x64xf32>, vector<64x64xf32>, vector<16x64xf32> -> vector<16x64xf32>
    %cst_28 = arith.constant dense<0.000000e+00> : vector<16x64xf32>
    %104 = tpu.matmul %93, %102, %cst_28 {dimension_numbers = #tpu.dot_dimension_numbers<[1], [0], [0], [1], [0, 0, 1, 1], [], []>, precision = #tpu.contract_precision<fp32>} : vector<16x64xf32>, vector<64x64xf32>, vector<16x64xf32> -> vector<16x64xf32>
    %105 = tpu.reciprocal %103 : vector<16x64xf32> -> vector<16x64xf32>
    %106 = arith.mulf %90, %105 : vector<16x64xf32>
    %107 = tpu.reciprocal %104 : vector<16x64xf32> -> vector<16x64xf32>
    %108 = arith.mulf %93, %107 : vector<16x64xf32>
    %109 = vector.broadcast %38 : vector<16x1xf32> to vector<16x64xf32>
    %110 = arith.mulf %109, %108 : vector<16x64xf32>
    %cst_29 = arith.constant 1.000000e+00 : f32
    %111 = vector.broadcast %cst_29 : f32 to vector<16x1xf32>
    %112 = arith.subf %111, %38 : vector<16x1xf32>
    %113 = vector.broadcast %112 : vector<16x1xf32> to vector<16x64xf32>
    %114 = arith.mulf %113, %106 : vector<16x64xf32>
    %115 = arith.addf %110, %114 : vector<16x64xf32>
    %cst_30 = arith.constant dense<0.000000e+00> : vector<16x32xf32>
    %116 = tpu.matmul %115, %53, %cst_30 {dimension_numbers = #tpu.dot_dimension_numbers<[1], [0], [0], [1], [0, 0, 1, 1], [], []>} : vector<16x64xf32>, vector<64x32xf32>, vector<16x32xf32> -> vector<16x32xf32>
    %c0_31 = arith.constant 0 : index
    %c0_32 = arith.constant 0 : index
    %117 = vector.load %arg3[%c0_31, %c0_32] : memref<32x32xf32, #tpu.memory_space<vmem>>, vector<32x32xf32>
    %cst_33 = arith.constant dense<0.000000e+00> : vector<16x32xf32>
    %118 = tpu.matmul %116, %117, %cst_33 {dimension_numbers = #tpu.dot_dimension_numbers<[1], [0], [0], [1], [0, 0, 1, 1], [], []>} : vector<16x32xf32>, vector<32x32xf32>, vector<16x32xf32> -> vector<16x32xf32>
    %c0_34 = arith.constant 0 : index
    %c0_35 = arith.constant 0 : index
    %119 = vector.load %arg5[%c0_34, %c0_35] : memref<16x32xf32, #tpu.memory_space<vmem>>, vector<16x32xf32>
    tpu.vector_store %arg5[%c0_34, %c0_35], %118 {strides = array<i32>} : memref<16x32xf32, #tpu.memory_space<vmem>>, vector<16x32xf32>,
    %cst_36 = arith.constant 9.99999974E-6 : f32
    %cst_37 = arith.constant 0.999989986 : f32
    %120 = vector.broadcast %cst_36 : f32 to vector<16x1xf32>
    %121 = arith.maximumf %120, %38 : vector<16x1xf32>
    %122 = vector.broadcast %cst_37 : f32 to vector<16x1xf32>
    %123 = arith.minimumf %122, %121 : vector<16x1xf32>
    %cst_38 = arith.constant 1.000000e+00 : f32
    %124 = vector.broadcast %cst_38 : f32 to vector<16x1xf32>
    %125 = arith.subf %124, %38 : vector<16x1xf32>
    %126 = arith.mulf %38, %125 : vector<16x1xf32>
    %cst_39 = arith.constant dense<0.000000e+00> : vector<1xf32>
    %127 = vector.multi_reduction <add>, %126, %cst_39 [0] : vector<16x1xf32> to vector<1xf32>
    %128 = vector.shape_cast %127 : vector<1xf32> to vector<1x1xf32>
    %129 = math.log %123 : vector<16x1xf32>
    %130 = arith.mulf %38, %129 : vector<16x1xf32>
    %cst_40 = arith.constant 1.000000e+00 : f32
    %131 = vector.broadcast %cst_40 : f32 to vector<16x1xf32>
    %132 = arith.subf %131, %38 : vector<16x1xf32>
    %cst_41 = arith.constant 1.000000e+00 : f32
    %133 = vector.broadcast %cst_41 : f32 to vector<16x1xf32>
    %134 = arith.subf %133, %123 : vector<16x1xf32>
    %135 = math.log %134 : vector<16x1xf32>
    %136 = arith.mulf %132, %135 : vector<16x1xf32>
    %137 = arith.addf %130, %136 : vector<16x1xf32>
    %cst_42 = arith.constant dense<0.000000e+00> : vector<1xf32>
    %138 = vector.multi_reduction <add>, %137, %cst_42 [0] : vector<16x1xf32> to vector<1xf32>
    %139 = vector.shape_cast %138 : vector<1xf32> to vector<1x1xf32>
    %cst_43 = arith.constant dense<0.000000e+00> : vector<1xf32>
    %140 = vector.multi_reduction <add>, %38, %cst_43 [0] : vector<16x1xf32> to vector<1xf32>
    %141 = vector.shape_cast %140 : vector<1xf32> to vector<1x1xf32>
    %cst_44 = arith.constant -1.000000e-01 : f32
    %142 = vector.broadcast %cst_44 : f32 to vector<1x1xf32>
    %143 = arith.mulf %142, %128 : vector<1x1xf32>
    %cst_45 = arith.constant 0.00999999977 : f32
    %144 = vector.broadcast %cst_45 : f32 to vector<1x1xf32>
    %145 = arith.mulf %144, %139 : vector<1x1xf32>
    %146 = arith.subf %143, %145 : vector<1x1xf32>
    %cst_46 = arith.constant 1.000000e-01 : f32
    %147 = vector.broadcast %cst_46 : f32 to vector<1x1xf32>
    %148 = arith.mulf %147, %141 : vector<1x1xf32>
    %149 = arith.addf %146, %148 : vector<1x1xf32>
    %cst_47 = arith.constant 6.250000e-02 : f32
    %150 = vector.broadcast %cst_47 : f32 to vector<1x1xf32>
    %151 = arith.mulf %149, %150 : vector<1x1xf32>
    %c0_48 = arith.constant 0 : index
    %c0_49 = arith.constant 0 : index
    %c0_50 = arith.constant 0 : index
    %152 = vector.load %arg6[%c0_48, %c0_49, %c0_50] : memref<1x1x1xf32, #tpu.memory_space<vmem>>, vector<1x1x1xf32>
    %153 = vector.shape_cast %152 : vector<1x1x1xf32> to vector<1x1xf32>
    %154 = vector.shape_cast %151 : vector<1x1xf32> to vector<1x1x1xf32>
    tpu.vector_store %arg6[%c0_48, %c0_49, %c0_50], %154 {strides = array<i32>} : memref<1x1x1xf32, #tpu.memory_space<vmem>>, vector<1x1x1xf32>,
    return
  }
  func.func @transform_0(%arg0: i32) -> (i32, i32) {
    %c0_i32 = arith.constant 0 : i32
    %c0_i32_0 = arith.constant 0 : i32
    return %arg0, %c0_i32 : i32, i32
  }
  func.func @transform_1(%arg0: i32) -> (i32, i32) {
    %c0_i32 = arith.constant 0 : i32
    %c0_i32_0 = arith.constant 0 : i32
    %c0_i32_1 = arith.constant 0 : i32
    return %c0_i32, %c0_i32_0 : i32, i32
  }
  func.func @transform_2(%arg0: i32) -> (i32, i32) {
    %c0_i32 = arith.constant 0 : i32
    %c0_i32_0 = arith.constant 0 : i32
    %c0_i32_1 = arith.constant 0 : i32
    return %c0_i32, %c0_i32_0 : i32, i32
  }
  func.func @transform_3(%arg0: i32) -> (i32, i32) {
    %c0_i32 = arith.constant 0 : i32
    %c0_i32_0 = arith.constant 0 : i32
    %c0_i32_1 = arith.constant 0 : i32
    return %c0_i32, %c0_i32_0 : i32, i32
  }
  func.func @transform_4(%arg0: i32) -> (i32, i32) {
    %c0_i32 = arith.constant 0 : i32
    %c0_i32_0 = arith.constant 0 : i32
    return %arg0, %c0_i32 : i32, i32
  }
  func.func @transform_5(%arg0: i32) -> (i32, i32, i32) {
    %c0_i32 = arith.constant 0 : i32
    %c0_i32_0 = arith.constant 0 : i32
    %c0_i32_1 = arith.constant 0 : i32
    return %arg0, %c0_i32, %c0_i32_0 : i32, i32, i32
  }
}

</mosaic_0001>

<llo_original>
// kernel: gated_duo_attention_forward.1
$region0: #{gated_duo_attention_forward.1}
  #allocation0 [shape = 'u32[]', space=smem, size = 0x4, offset = 0x4, fixed_abs, tag = 'smem constant byte address 0x4 - core index']
  #allocation1 [shape = 'u32[144,128]{1,0:T(1,128)}', space=vmem, size = 0x12000, scoped, tag = 'internal scratch']
  %s0 = inlined_call_operand.vmem [shape: f32[16,32], index: 0, kind: input, shape index: {}]
  %s1 = inlined_call_operand.vmem [shape: f32[32,49], index: 1, kind: input, shape index: {}]
  %s2 = inlined_call_operand.vmem [shape: f32[32,32], index: 2, kind: input, shape index: {}]
  %s3 = inlined_call_operand.vmem [shape: f32[1,2], index: 3, kind: input, shape index: {}]
  %s4 = inlined_call_operand.hbm [shape: f32[16,32], index: 4, kind: output, shape index: {0}]
  %s5 = inlined_call_operand.hbm [shape: f32[1,1,1], index: 5, kind: output, shape index: {1}]
  %6 = xla_tuple %s4, %s5
  %s7 = sld [smem:[#allocation0]]
  $region34: #{gated_duo_attention_forward.1} parent=0
    _
  %s9 = ssub.s32 1, %s7
  %s10 = scalar_select 0, %s9, %s7
  $region1: #{gated_duo_attention_forward.1} parent=0
    #allocation2 [shape = 'u8[8192]{0}', space=vmem, size = 0x2000, scoped, tag = 'output window, operand 0, single buffered']
    #allocation3 [shape = 's32[1]{0}', space=sflag, size = 0x4, scoped, tag = 'scoped memory for gated_duo_attention_forward.1']
    #allocation4 [shape = 'u8[512]{0}', space=vmem, size = 0x400, scoped, tag = 'output window, operand 1, single buffered']
    #allocation5 [shape = 's32[1]{0}', space=sflag, size = 0x4, scoped, tag = 'scoped memory for gated_duo_attention_forward.1']
    %11 = vsyncpa [#allocation3], 0
    %12 = vsyncpa [#allocation5], 0
    // Predicated region
    $region2: #{gated_duo_attention_forward.1} parent=1 // pred_check
      _
    $region3: #{gated_duo_attention_forward.1} parent=1 // pred_check_branch
      %14 = sbr.rel (0) target = $region5
    $region4: #{gated_duo_attention_forward.1} parent=1 // pred_region
      _
    $region5: #{gated_duo_attention_forward.1} parent=1 // pred_fallthru
      _
    // Predicated region
    $region6: #{gated_duo_attention_forward.1} parent=1 // pred_check
      _
    $region7: #{gated_duo_attention_forward.1} parent=1 // pred_check_branch
      %16 = sbr.rel (0) target = $region9
    $region8: #{gated_duo_attention_forward.1} parent=1 // pred_region
      _
    $region9: #{gated_duo_attention_forward.1} parent=1 // pred_fallthru
      _
    // Predicated region
    $region10: #{gated_duo_attention_forward.1} parent=1 // pred_check
      _
    $region11: #{gated_duo_attention_forward.1} parent=1 // pred_check_branch
      %18 = sbr.rel (0) target = $region13
    $region12: #{gated_duo_attention_forward.1} parent=1 // pred_region
      _
    $region13: #{gated_duo_attention_forward.1} parent=1 // pred_fallthru
      _
    // Predicated region
    $region14: #{gated_duo_attention_forward.1} parent=1 // pred_check
      _
    $region15: #{gated_duo_attention_forward.1} parent=1 // pred_check_branch
      %20 = sbr.rel (0) target = $region17
    $region16: #{gated_duo_attention_forward.1} parent=1 // pred_region
      _
    $region17: #{gated_duo_attention_forward.1} parent=1 // pred_fallthru
      _
    %v21 = vld [vmem:[%s0] sm:$0xff]
    %v22 = vld [vmem:[%s0 + $0x8] sm:$0xff]
    %vm23 = vcmask 261120
    %v24 = vsel %vm23, %v21, 0.0
    %25 = vadd.xlane.f32.xlu0 %v24
    %v26 = vpop.xlane.xlu0 %25
    %v27 = vsel %vm23, %v22, 0.0
    %28 = vadd.xlane.f32.xlu0 %v27
    %v29 = vpop.xlane.xlu0 %28
    %v30 = vrcp.pop 32.0
    %v31 = vmul.f32 %v26, %v30
    %v32 = vmul.f32 %v29, %v30
    %v33 = vsub.f32 %v21, %v31
    %v34 = vsub.f32 %v22, %v32
    %v35 = vmul.f32 %v33, %v33
    %v36 = vmul.f32 %v34, %v34
    %v37 = vsel %vm23, %v35, 0.0
    %38 = vadd.xlane.f32.xlu0 %v37
    %v39 = vpop.xlane.xlu0 %38
    %v40 = vsel %vm23, %v36, 0.0
    %41 = vadd.xlane.f32.xlu0 %v40
    %v42 = vpop.xlane.xlu0 %41
    %v43 = vmul.f32 %v39, %v30
    %v44 = vmul.f32 %v42, %v30
    %v45 = vadd.f32 %v43, 1e-05
    %v46 = vadd.f32 %v44, 1e-05
    %v47 = vrsqrt.pop %v45
    %v48 = vrsqrt.pop %v46
    %v49 = vld [vmem:[%s1] sm:$0xff]
    %v50 = vld [vmem:[%s1 + $0x8] sm:$0xff]
    %v51 = vld [vmem:[%s1 + $0x10] sm:$0xff]
    %v52 = vld [vmem:[%s1 + $0x18] sm:$0xff]
    %v54 = vsel %vm23, %v21, 0
    %v57 = vsel %vm23, %v22, 0
    %59 = vmatprep.subr.mxu0 0.0
    %60 = vmatpush1.msra.mxu0 %v49
    %61 = vmatprep.subr.mxu0 0.0
    %62 = vmatpush1.msra.mxu0 %v50
    %63 = vmatprep.subr.mxu0 0.0
    %64 = vmatpush1.msra.mxu0 %v51
    %65 = vmatprep.subr.mxu0 0.0
    %66 = vmatpush1.msra.mxu0 %v52
    %67 = vmatprep.subr.mxu0 0.0
    %68 = vmatpush1.msra.mxu0 0.0
    %69 = vmatprep.subr.mxu0 0.0
    %70 = vmatpush1.msra.mxu0 0.0
    %71 = vmatprep.subr.mxu0 0.0
    %72 = vmatpush1.msra.mxu0 0.0
    %73 = vmatprep.subr.mxu0 0.0
    %74 = vmatpush1.msra.mxu0 0.0
    %75 = vmatprep.subr.mxu0 0.0
    %76 = vmatpush1.msra.mxu0 0.0
    %77 = vmatprep.subr.mxu0 0.0
    %78 = vmatpush1.msra.mxu0 0.0
    %79 = vmatprep.subr.mxu0 0.0
    %80 = vmatpush1.msra.mxu0 0.0
    %81 = vmatprep.subr.mxu0 0.0
    %82 = vmatpush1.msra.mxu0 0.0
    %83 = vmatprep.subr.mxu0 0.0
    %84 = vmatpush1.msra.mxu0 0.0
    %85 = vmatprep.subr.mxu0 0.0
    %86 = vmatpush1.msra.mxu0 0.0
    %87 = vmatprep.subr.mxu0 0.0
    %88 = vmatpush1.msra.mxu0 0.0
    %89 = vmatprep.subr.mxu0 0.0
    %90 = vmatpush1.msra.mxu0 0.0
    %91 = vmatprep.subr.mxu0 0.0
    %92 = vmatpush1.msra.mxu0 0.0
    %93 = vmatprep.subr.mxu0 0.0
    %94 = vmatpush1.msra.mxu0 0.0
    %95 = vmatprep.subr.mxu0 0.0
    %96 = vmatpush1.msra.mxu0 0.0
    %97 = vmatprep.subr.mxu0 0.0
    %98 = vmatpush1.msra.mxu0 0.0
    %99 = vmatprep.subr.mxu0 0.0
    %100 = vmatpush1.msra.mxu0 0.0
    %101 = vmatprep.subr.mxu0 0.0
    %102 = vmatpush1.msra.mxu0 0.0
    %103 = vmatprep.subr.mxu0 0.0
    %104 = vmatpush1.msra.mxu0 0.0
    %105 = vmatprep.subr.mxu0 0.0
    %106 = vmatpush1.msra.mxu0 0.0
    %107 = vmatprep.subr.mxu0 0.0
    %108 = vmatpush1.msra.mxu0 0.0
    %109 = vmatprep.subr.mxu0 0.0
    %110 = vmatpush1.msra.mxu0 0.0
    %111 = vmatprep.subr.mxu0 0.0
    %112 = vmatpush1.msra.mxu0 0.0
    %113 = vmatprep.subr.mxu0 0.0
    %114 = vmatpush1.msra.mxu0 0.0
    %115 = vmatprep.subr.mxu0 0.0
    %116 = vmatpush1.msra.mxu0 0.0
    %117 = vmatprep.subr.mxu0 0.0
    %118 = vmatpush1.msra.mxu0 0.0
    %119 = vmatprep.subr.mxu0 0.0
    %120 = vmatpush1.msra.mxu0 0.0
    %121 = vmatprep.subr.mxu0 0.0
    %122 = vmatpush1.msra.mxu0 0.0
    %123 = vmatprep.mubr.f32.mxu0 0.0
    %124 = vmatmul.mubr.f32.gmra.mrb[0].mxu0 %v54
    %v125 = vpop.f32.mrb[0].mxu0
    %v126 = vadd.f32 0.0, %v125
    %v127 = vpop.f32.mrb[0].mxu0
    %128 = vmatprep.mubr.f32.mxu0 0.0
    %129 = vmatmul.mubr.f32.gmra.mrb[0].mxu0 %v57
    %v130 = vpop.f32.mrb[0].mxu0
    %v131 = vadd.f32 0.0, %v130
    %v132 = vpop.f32.mrb[0].mxu0
    %133 = vdwg.mxu0
    %v134 = vld [vmem:[%s3] sm:$0x1]
    %v136 = vlaneseq
    %v137 = vshrl.u32 %v136, 7
    %v138 = vsub.s32 0, %v137
    %v139 = vrot.slane %v134, %v138
    %v141 = vmul.f32 %v31, %v139
    %v142 = vmul.f32 %v32, %v139
    %145 = vrot.lane.b32.xlu0 %v141, 48
    %v146 = vpop.permute.xlu0 %145
    %147 = vrot.lane.b32.xlu0 %v142, 48
    %v148 = vpop.permute.xlu0 %147
    %v151 = vsub.f32 %v126, %v146
    %v152 = vsub.f32 %v131, %v148
    %v153 = vmul.f32 %v47, %v151
    %v154 = vmul.f32 %v48, %v152
    %155 = vrot.lane.b32.xlu0 %v139, 47
    %v156 = vpop.permute.xlu0 %155
    %v158 = vadd.f32 %v153, %v156
    %v159 = vadd.f32 %v154, %v156
    %v160 = vmax.f32 %v158, -10.0
    %v161 = vmax.f32 %v159, -10.0
    %v162 = vmin.f32 %v160, 10.0
    %v163 = vmin.f32 %v161, 10.0
    %v164 = vxor.u32 %v162, 2147483648
    %v165 = vxor.u32 %v163, 2147483648
    %v166 = vmul.f32 %v164, 1.442695
    %v167 = vpow.pop %v166
    %v168 = vmul.f32 %v165, 1.442695
    %v169 = vpow.pop %v168
    %v170 = vadd.f32 %v167, 1.0
    %v171 = vadd.f32 %v169, 1.0
    %v172 = vrcp.pop %v170
    %v173 = vmul.f32 1.0, %v172
    %v174 = vrcp.pop %v171
    %v175 = vmul.f32 1.0, %v174
    %v176 = vlaneseq
    %v177 = vshrl.u32 %v176, 7
    %v178 = vadd.s32 %v177, 8
    %v179 = vadd.s32 %v177, 16
    %v180 = vadd.s32 %v177, 24
    %v181 = vadd.s32 %v177, 32
    %v182 = vadd.s32 %v177, 40
    %v183 = vadd.s32 %v177, 48
    %v184 = vadd.s32 %v177, 56
    %v185 = vlaneseq
    %v186 = vand.u32 %v185, 127
    %v187 = vshra.s32 %v177, 4
    %v188 = vshra.s32 %v178, 4
    %v189 = vshra.s32 %v179, 4
    %v190 = vshra.s32 %v180, 4
    %v191 = vshra.s32 %v181, 4
    %v192 = vshra.s32 %v182, 4
    %v193 = vshra.s32 %v183, 4
    %v194 = vshra.s32 %v184, 4
    %v195 = vshra.s32 %v186, 3
    %vm196 = vcmp.eq.s32.totalorder %v187, %v195
    %vm197 = vcmp.eq.s32.totalorder %v188, %v195
    %vm198 = vcmp.eq.s32.totalorder %v189, %v195
    %vm199 = vcmp.eq.s32.totalorder %v190, %v195
    %vm200 = vcmp.eq.s32.totalorder %v191, %v195
    %vm201 = vcmp.eq.s32.totalorder %v192, %v195
    %vm202 = vcmp.eq.s32.totalorder %v193, %v195
    %vm203 = vcmp.eq.s32.totalorder %v194, %v195
    %206 = vrot.lane.b32.xlu0 %v126, 96
    %v207 = vpop.permute.xlu0 %206
    %208 = vrot.lane.b32.xlu0 %v131, 96
    %v209 = vpop.permute.xlu0 %208
    %212 = vrot.lane.b32.xlu0 %v126, 104
    %v213 = vpop.permute.xlu0 %212
    %214 = vrot.lane.b32.xlu0 %v131, 104
    %v215 = vpop.permute.xlu0 %214
    %218 = vrot.lane.b32.xlu0 %v126, 112
    %v219 = vpop.permute.xlu0 %218
    %220 = vrot.lane.b32.xlu0 %v131, 112
    %v221 = vpop.permute.xlu0 %220
    %224 = vrot.lane.b32.xlu0 %v126, 120
    %v225 = vpop.permute.xlu0 %224
    %226 = vrot.lane.b32.xlu0 %v131, 120
    %v227 = vpop.permute.xlu0 %226
    %vm230 = vcmask 64512
    %v231 = vsel %vm230, %v207, %v213
    %v232 = vsel %vm230, %v209, %v215
    %vm233 = vcmask 130048
    %v234 = vsel %vm233, %v231, %v219
    %v235 = vsel %vm233, %v232, %v221
    %vm236 = vcmask 195584
    %v237 = vsel %vm236, %v234, %v225
    %v238 = vsel %vm236, %v235, %v227
    %239 = vrot.lane.b32.xlu0 %v126, 88
    %v240 = vpop.permute.xlu0 %239
    %241 = vrot.lane.b32.xlu0 %v131, 88
    %v242 = vpop.permute.xlu0 %241
    %v245 = vsel %vm230, %v240, %v207
    %v246 = vsel %vm230, %v242, %v209
    %v247 = vsel %vm233, %v245, %v213
    %v248 = vsel %vm233, %v246, %v215
    %v249 = vsel %vm236, %v247, %v219
    %v250 = vsel %vm236, %v248, %v221
    %v251 = vsel %vm196, %v237, 0.0
    %v252 = vsel %vm197, %v238, 0.0
    %v253 = vsel %vm198, %v237, 0.0
    %v254 = vsel %vm199, %v238, 0.0
    %v255 = vsel %vm200, %v237, 0.0
    %v256 = vsel %vm201, %v238, 0.0
    %v257 = vsel %vm202, %v237, 0.0
    %v258 = vsel %vm203, %v238, 0.0
    %v259 = vsel %vm196, %v249, 0.0
    %v260 = vsel %vm197, %v250, 0.0
    %v261 = vsel %vm198, %v249, 0.0
    %v262 = vsel %vm199, %v250, 0.0
    %v263 = vsel %vm200, %v249, 0.0
    %v264 = vsel %vm201, %v250, 0.0
    %v265 = vsel %vm202, %v249, 0.0
    %v266 = vsel %vm203, %v250, 0.0
    %v267 = vsel %vm23, %v126, 0
    %v269 = vsel %vm23, %v131, 0
    %v272 = vsel %vm23, %v251, 0
    %v275 = vsel %vm23, %v252, 0
    %v278 = vsel %vm23, %v253, 0
    %v281 = vsel %vm23, %v254, 0
    %v284 = vsel %vm23, %v255, 0
    %v287 = vsel %vm23, %v256, 0
    %v290 = vsel %vm23, %v257, 0
    %v293 = vsel %vm23, %v258, 0
    %295 = vmatprep.subr.mxu0 0.0
    %296 = vmatpush1.xpose.msra.mxu0 %v272
    %297 = vmatprep.subr.mxu0 0.0
    %298 = vmatpush1.xpose.msra.mxu0 %v275
    %299 = vmatprep.subr.mxu0 0.0
    %300 = vmatpush1.xpose.msra.mxu0 %v278
    %301 = vmatprep.subr.mxu0 0.0
    %302 = vmatpush1.xpose.msra.mxu0 %v281
    %303 = vmatprep.subr.mxu0 0.0
    %304 = vmatpush1.xpose.msra.mxu0 %v284
    %305 = vmatprep.subr.mxu0 0.0
    %306 = vmatpush1.xpose.msra.mxu0 %v287
    %307 = vmatprep.subr.mxu0 0.0
    %308 = vmatpush1.xpose.msra.mxu0 %v290
    %309 = vmatprep.subr.mxu0 0.0
    %310 = vmatpush1.xpose.msra.mxu0 %v293
    %311 = vmatprep.subr.mxu0 0.0
    %312 = vmatpush1.xpose.msra.mxu0 0.0
    %313 = vmatprep.subr.mxu0 0.0
    %314 = vmatpush1.xpose.msra.mxu0 0.0
    %315 = vmatprep.subr.mxu0 0.0
    %316 = vmatpush1.xpose.msra.mxu0 0.0
    %317 = vmatprep.subr.mxu0 0.0
    %318 = vmatpush1.xpose.msra.mxu0 0.0
    %319 = vmatprep.subr.mxu0 0.0
    %320 = vmatpush1.xpose.msra.mxu0 0.0
    %321 = vmatprep.subr.mxu0 0.0
    %322 = vmatpush1.xpose.msra.mxu0 0.0
    %323 = vmatprep.subr.mxu0 0.0
    %324 = vmatpush1.xpose.msra.mxu0 0.0
    %325 = vmatprep.subr.mxu0 0.0
    %326 = vmatpush1.xpose.msra.mxu0 0.0
    %327 = vmatprep.subr.mxu0 0.0
    %328 = vmatpush1.xpose.msra.mxu0 0.0
    %329 = vmatprep.subr.mxu0 0.0
    %330 = vmatpush1.xpose.msra.mxu0 0.0
    %331 = vmatprep.subr.mxu0 0.0
    %332 = vmatpush1.xpose.msra.mxu0 0.0
    %333 = vmatprep.subr.mxu0 0.0
    %334 = vmatpush1.xpose.msra.mxu0 0.0
    %335 = vmatprep.subr.mxu0 0.0
    %336 = vmatpush1.xpose.msra.mxu0 0.0
    %337 = vmatprep.subr.mxu0 0.0
    %338 = vmatpush1.xpose.msra.mxu0 0.0
    %339 = vmatprep.subr.mxu0 0.0
    %340 = vmatpush1.xpose.msra.mxu0 0.0
    %341 = vmatprep.subr.mxu0 0.0
    %342 = vmatpush1.xpose.msra.mxu0 0.0
    %343 = vmatprep.subr.mxu0 0.0
    %344 = vmatpush1.xpose.msra.mxu0 0.0
    %345 = vmatprep.subr.mxu0 0.0
    %346 = vmatpush1.xpose.msra.mxu0 0.0
    %347 = vmatprep.subr.mxu0 0.0
    %348 = vmatpush1.xpose.msra.mxu0 0.0
    %349 = vmatprep.subr.mxu0 0.0
    %350 = vmatpush1.xpose.msra.mxu0 0.0
    %351 = vmatprep.subr.mxu0 0.0
    %352 = vmatpush1.xpose.msra.mxu0 0.0
    %353 = vmatprep.subr.mxu0 0.0
    %354 = vmatpush1.xpose.msra.mxu0 0.0
    %355 = vmatprep.subr.mxu0 0.0
    %356 = vmatpush1.xpose.msra.mxu0 0.0
    %357 = vmatprep.subr.mxu0 0.0
    %358 = vmatpush1.xpose.msra.mxu0 0.0
    %359 = vmatprep.mubr.f32.mxu0 0.0
    %360 = vmatmul.mubr.f32.gmra.mrb[0].mxu0 %v267
    %v361 = vpop.f32.mrb[0].mxu0
    %v362 = vadd.f32 0.0, %v361
    %v363 = vpop.f32.mrb[0].mxu0
    %364 = vmatprep.mubr.f32.mxu0 0.0
    %365 = vmatmul.mubr.f32.gmra.mrb[0].mxu0 %v269
    %v366 = vpop.f32.mrb[0].mxu0
    %v367 = vadd.f32 0.0, %v366
    %v368 = vpop.f32.mrb[0].mxu0
    %369 = vdwg.mxu0
    %v370 = vmul.f32 %v362, 0.35355338
    %v371 = vmul.f32 %v367, 0.35355338
    %v372 = vand.u32 %v177, 7
    %v373 = vand.u32 %v178, 7
    %v374 = vshra.s32 %v177, 3
    %v375 = vshra.s32 %v178, 3
    %v376 = vand.u32 %v186, 7
    %v377 = vand.u32 %v195, 1
    %vm378 = vcmp.eq.s32.totalorder %v374, %v377
    %vm379 = vcmp.eq.s32.totalorder %v375, %v377
    %vm380 = vcmp.le.s32.totalorder %v376, %v372
    %vm381 = vcmp.le.s32.totalorder %v376, %v373
    %vm382 = vmand %vm378, %vm380
    %vm383 = vmand %vm379, %vm381
    %v384 = vsub.s32 %v372, 2
    %v385 = vsub.s32 %v373, 2
    %vm386 = vcmp.ge.s32.totalorder %v376, %v384
    %vm387 = vcmp.ge.s32.totalorder %v376, %v385
    %vm388 = vmand %vm378, %vm386
    %vm389 = vmand %vm379, %vm387
    %v390 = vadd.s32 %v372, 2
    %v391 = vadd.s32 %v373, 2
    %vm392 = vcmp.le.s32.totalorder %v376, %v390
    %vm393 = vcmp.le.s32.totalorder %v376, %v391
    %vm394 = vmand %vm388, %vm392
    %vm395 = vmand %vm389, %vm393
    %v396 = vsel %vm382, %v370, -1e+30
    %v397 = vsel %vm383, %v371, -1e+30
    %v398 = vsel %vm394, %v370, -1e+30
    %v399 = vsel %vm395, %v371, -1e+30
    %vm400 = vcmask 523264
    %v401 = vsel %vm400, %v396, -inf
    %402 = vmax.xlane.f32.xlu0 %v401
    %v403 = vpop.xlane.xlu0 %402
    %v404 = vsel %vm400, %v397, -inf
    %405 = vmax.xlane.f32.xlu0 %v404
    %v406 = vpop.xlane.xlu0 %405
    %v407 = vsel %vm400, %v398, -inf
    %408 = vmax.xlane.f32.xlu0 %v407
    %v409 = vpop.xlane.xlu0 %408
    %v410 = vsel %vm400, %v399, -inf
    %411 = vmax.xlane.f32.xlu0 %v410
    %v412 = vpop.xlane.xlu0 %411
    %v413 = vsub.f32 %v396, %v403
    %v414 = vsub.f32 %v397, %v406
    %v415 = vmul.f32 %v413, 1.442695
    %v416 = vpow.pop %v415
    %v417 = vmul.f32 %v414, 1.442695
    %v418 = vpow.pop %v417
    %v419 = vsub.f32 %v398, %v409
    %v420 = vsub.f32 %v399, %v412
    %v421 = vmul.f32 %v419, 1.442695
    %v422 = vpow.pop %v421
    %v423 = vmul.f32 %v420, 1.442695
    %v424 = vpow.pop %v423
    %v425 = vshra.s32 %v186, 4
    %vm426 = vcmp.eq.s32.totalorder %v187, %v425
    %vm427 = vcmp.eq.s32.totalorder %v188, %v425
    %vm428 = vcmp.eq.s32.totalorder %v189, %v425
    %vm429 = vcmp.eq.s32.totalorder %v190, %v425
    %vm430 = vcmp.eq.s32.totalorder %v191, %v425
    %vm431 = vcmp.eq.s32.totalorder %v192, %v425
    %vm432 = vcmp.eq.s32.totalorder %v193, %v425
    %vm433 = vcmp.eq.s32.totalorder %v194, %v425
    %v434 = vsel %vm426, 1, 0
    %v435 = vsel %vm427, 1, 0
    %v436 = vsel %vm428, 1, 0
    %v437 = vsel %vm429, 1, 0
    %v438 = vsel %vm430, 1, 0
    %v439 = vsel %vm431, 1, 0
    %v440 = vsel %vm432, 1, 0
    %v441 = vsel %vm433, 1, 0
    %v442 = vcvt.s32.f32 %v434
    %v443 = vcvt.s32.f32 %v435
    %v444 = vcvt.s32.f32 %v436
    %v445 = vcvt.s32.f32 %v437
    %v446 = vcvt.s32.f32 %v438
    %v447 = vcvt.s32.f32 %v439
    %v448 = vcvt.s32.f32 %v440
    %v449 = vcvt.s32.f32 %v441
    %v451 = vsel %vm400, %v416, 0
    %v454 = vsel %vm400, %v418, 0
    %456 = vmatprep.subr.mxu0 0.0
    %v457 = vand.u32 %v442, 4294901760
    %458 = vmatpush1.msra.mxu0 %v457
    %459 = vmatprep.subr.mxu0 0.0
    %v460 = vand.u32 %v443, 4294901760
    %461 = vmatpush1.msra.mxu0 %v460
    %462 = vmatprep.subr.mxu0 0.0
    %v463 = vand.u32 %v444, 4294901760
    %464 = vmatpush1.msra.mxu0 %v463
    %465 = vmatprep.subr.mxu0 0.0
    %v466 = vand.u32 %v445, 4294901760
    %467 = vmatpush1.msra.mxu0 %v466
    %468 = vmatprep.subr.mxu0 0.0
    %v469 = vand.u32 %v446, 4294901760
    %470 = vmatpush1.msra.mxu0 %v469
    %471 = vmatprep.subr.mxu0 0.0
    %v472 = vand.u32 %v447, 4294901760
    %473 = vmatpush1.msra.mxu0 %v472
    %474 = vmatprep.subr.mxu0 0.0
    %v475 = vand.u32 %v448, 4294901760
    %476 = vmatpush1.msra.mxu0 %v475
    %477 = vmatprep.subr.mxu0 0.0
    %v478 = vand.u32 %v449, 4294901760
    %479 = vmatpush1.msra.mxu0 %v478
    %480 = vmatprep.subr.mxu0 0.0
    %481 = vmatpush1.msra.mxu0 0.0
    %482 = vmatprep.subr.mxu0 0.0
    %483 = vmatpush1.msra.mxu0 0.0
    %484 = vmatprep.subr.mxu0 0.0
    %485 = vmatpush1.msra.mxu0 0.0
    %486 = vmatprep.subr.mxu0 0.0
    %487 = vmatpush1.msra.mxu0 0.0
    %488 = vmatprep.subr.mxu0 0.0
    %489 = vmatpush1.msra.mxu0 0.0
    %490 = vmatprep.subr.mxu0 0.0
    %491 = vmatpush1.msra.mxu0 0.0
    %492 = vmatprep.subr.mxu0 0.0
    %493 = vmatpush1.msra.mxu0 0.0
    %494 = vmatprep.subr.mxu0 0.0
    %495 = vmatpush1.msra.mxu0 0.0
    %496 = vmatprep.subr.mxu0 0.0
    %497 = vmatpush1.msra.mxu0 0.0
    %498 = vmatprep.subr.mxu0 0.0
    %499 = vmatpush1.msra.mxu0 0.0
    %500 = vmatprep.subr.mxu0 0.0
    %501 = vmatpush1.msra.mxu0 0.0
    %502 = vmatprep.subr.mxu0 0.0
    %503 = vmatpush1.msra.mxu0 0.0
    %504 = vmatprep.subr.mxu0 0.0
    %505 = vmatpush1.msra.mxu0 0.0
    %506 = vmatprep.subr.mxu0 0.0
    %507 = vmatpush1.msra.mxu0 0.0
    %508 = vmatprep.subr.mxu0 0.0
    %509 = vmatpush1.msra.mxu0 0.0
    %510 = vmatprep.subr.mxu0 0.0
    %511 = vmatpush1.msra.mxu0 0.0
    %512 = vmatprep.subr.mxu0 0.0
    %513 = vmatpush1.msra.mxu0 0.0
    %514 = vmatprep.subr.mxu0 0.0
    %515 = vmatpush1.msra.mxu0 0.0
    %516 = vmatprep.subr.mxu0 0.0
    %517 = vmatpush1.msra.mxu0 0.0
    %518 = vmatprep.subr.mxu0 0.0
    %519 = vmatpush1.msra.mxu0 0.0
    %520 = vmatprep.subr.mxu0 0.0
    %521 = vmatpush1.msra.mxu0 0.0
    %522 = vmatprep.subr.mxu0 0.0
    %523 = vmatpush1.msra.mxu0 0.0
    %524 = vmatprep.subr.mxu0 0.0
    %525 = vmatpush1.msra.mxu0 0.0
    %526 = vmatprep.subr.mxu0 0.0
    %527 = vmatpush1.msra.mxu0 0.0
    %528 = vmatprep.mubr.f32.mxu0 0.0
    %v529 = vand.u32 %v451, 4294901760
    %v530 = vsub.f32 %v451, %v529
    %v531 = vand.u32 %v530, 4294901760
    %v532 = vsub.f32 %v530, %v531
    %v533 = vand.u32 %v532, 4294901760
    %534 = vmatmul.mubr.f32.gmra.mrb[0].mxu0 %v533
    %v535 = vpop.f32.mrb[0].mxu0
    %v536 = vadd.f32 0.0, %v535
    %v537 = vpop.f32.mrb[0].mxu0
    %538 = vmatprep.mubr.f32.mxu0 0.0
    %v539 = vand.u32 %v454, 4294901760
    %v540 = vsub.f32 %v454, %v539
    %v541 = vand.u32 %v540, 4294901760
    %v542 = vsub.f32 %v540, %v541
    %v543 = vand.u32 %v542, 4294901760
    %544 = vmatmul.mubr.f32.gmra.mrb[0].mxu0 %v543
    %v545 = vpop.f32.mrb[0].mxu0
    %v546 = vadd.f32 0.0, %v545
    %v547 = vpop.f32.mrb[0].mxu0
    %548 = vdwg.mxu0
    %549 = vmatprep.subr.mxu0 0.0
    %v550 = vand.u32 %v442, 4294901760
    %v551 = vsub.f32 %v442, %v550
    %v552 = vand.u32 %v551, 4294901760
    %v553 = vsub.f32 %v551, %v552
    %v554 = vand.u32 %v553, 4294901760
    %555 = vmatpush1.msra.mxu0 %v554
    %556 = vmatprep.subr.mxu0 0.0
    %v557 = vand.u32 %v443, 4294901760
    %v558 = vsub.f32 %v443, %v557
    %v559 = vand.u32 %v558, 4294901760
    %v560 = vsub.f32 %v558, %v559
    %v561 = vand.u32 %v560, 4294901760
    %562 = vmatpush1.msra.mxu0 %v561
    %563 = vmatprep.subr.mxu0 0.0
    %v564 = vand.u32 %v444, 4294901760
    %v565 = vsub.f32 %v444, %v564
    %v566 = vand.u32 %v565, 4294901760
    %v567 = vsub.f32 %v565, %v566
    %v568 = vand.u32 %v567, 4294901760
    %569 = vmatpush1.msra.mxu0 %v568
    %570 = vmatprep.subr.mxu0 0.0
    %v571 = vand.u32 %v445, 4294901760
    %v572 = vsub.f32 %v445, %v571
    %v573 = vand.u32 %v572, 4294901760
    %v574 = vsub.f32 %v572, %v573
    %v575 = vand.u32 %v574, 4294901760
    %576 = vmatpush1.msra.mxu0 %v575
    %577 = vmatprep.subr.mxu0 0.0
    %v578 = vand.u32 %v446, 4294901760
    %v579 = vsub.f32 %v446, %v578
    %v580 = vand.u32 %v579, 4294901760
    %v581 = vsub.f32 %v579, %v580
    %v582 = vand.u32 %v581, 4294901760
    %583 = vmatpush1.msra.mxu0 %v582
    %584 = vmatprep.subr.mxu0 0.0
    %v585 = vand.u32 %v447, 4294901760
    %v586 = vsub.f32 %v447, %v585
    %v587 = vand.u32 %v586, 4294901760
    %v588 = vsub.f32 %v586, %v587
    %v589 = vand.u32 %v588, 4294901760
    %590 = vmatpush1.msra.mxu0 %v589
    %591 = vmatprep.subr.mxu0 0.0
    %v592 = vand.u32 %v448, 4294901760
    %v593 = vsub.f32 %v448, %v592
    %v594 = vand.u32 %v593, 4294901760
    %v595 = vsub.f32 %v593, %v594
    %v596 = vand.u32 %v595, 4294901760
    %597 = vmatpush1.msra.mxu0 %v596
    %598 = vmatprep.subr.mxu0 0.0
    %v599 = vand.u32 %v449, 4294901760
    %v600 = vsub.f32 %v449, %v599
    %v601 = vand.u32 %v600, 4294901760
    %v602 = vsub.f32 %v600, %v601
    %v603 = vand.u32 %v602, 4294901760
    %604 = vmatpush1.msra.mxu0 %v603
    %605 = vmatprep.subr.mxu0 0.0
    %606 = vmatpush1.msra.mxu0 0.0
    %607 = vmatprep.subr.mxu0 0.0
    %608 = vmatpush1.msra.mxu0 0.0
    %609 = vmatprep.subr.mxu0 0.0
    %610 = vmatpush1.msra.mxu0 0.0
    %611 = vmatprep.subr.mxu0 0.0
    %612 = vmatpush1.msra.mxu0 0.0
    %613 = vmatprep.subr.mxu0 0.0
    %614 = vmatpush1.msra.mxu0 0.0
    %615 = vmatprep.subr.mxu0 0.0
    %616 = vmatpush1.msra.mxu0 0.0
    %617 = vmatprep.subr.mxu0 0.0
    %618 = vmatpush1.msra.mxu0 0.0
    %619 = vmatprep.subr.mxu0 0.0
    %620 = vmatpush1.msra.mxu0 0.0
    %621 = vmatprep.subr.mxu0 0.0
    %622 = vmatpush1.msra.mxu0 0.0
    %623 = vmatprep.subr.mxu0 0.0
    %624 = vmatpush1.msra.mxu0 0.0
    %625 = vmatprep.subr.mxu0 0.0
    %626 = vmatpush1.msra.mxu0 0.0
    %627 = vmatprep.subr.mxu0 0.0
    %628 = vmatpush1.msra.mxu0 0.0
    %629 = vmatprep.subr.mxu0 0.0
    %630 = vmatpush1.msra.mxu0 0.0
    %631 = vmatprep.subr.mxu0 0.0
    %632 = vmatpush1.msra.mxu0 0.0
    %633 = vmatprep.subr.mxu0 0.0
    %634 = vmatpush1.msra.mxu0 0.0
    %635 = vmatprep.subr.mxu0 0.0
    %636 = vmatpush1.msra.mxu0 0.0
    %637 = vmatprep.subr.mxu0 0.0
    %638 = vmatpush1.msra.mxu0 0.0
    %639 = vmatprep.subr.mxu0 0.0
    %640 = vmatpush1.msra.mxu0 0.0
    %641 = vmatprep.subr.mxu0 0.0
    %642 = vmatpush1.msra.mxu0 0.0
    %643 = vmatprep.subr.mxu0 0.0
    %644 = vmatpush1.msra.mxu0 0.0
    %645 = vmatprep.subr.mxu0 0.0
    %646 = vmatpush1.msra.mxu0 0.0
    %647 = vmatprep.subr.mxu0 0.0
    %648 = vmatpush1.msra.mxu0 0.0
    %649 = vmatprep.subr.mxu0 0.0
    %650 = vmatpush1.msra.mxu0 0.0
    %651 = vmatprep.subr.mxu0 0.0
    %652 = vmatpush1.msra.mxu0 0.0
    %653 = vmatprep.mubr.f32.mxu0 0.0
    %v654 = vand.u32 %v451, 4294901760
    %655 = vmatmul.mubr.f32.gmra.mrb[0].mxu0 %v654
    %v656 = vpop.f32.mrb[0].mxu0
    %v657 = vadd.f32 %v536, %v656
    %v658 = vpop.f32.mrb[0].mxu0
    %659 = vmatprep.mubr.f32.mxu0 0.0
    %v660 = vand.u32 %v454, 4294901760
    %661 = vmatmul.mubr.f32.gmra.mrb[0].mxu0 %v660
    %v662 = vpop.f32.mrb[0].mxu0
    %v663 = vadd.f32 %v546, %v662
    %v664 = vpop.f32.mrb[0].mxu0
    %665 = vdwg.mxu0
    %666 = vmatprep.subr.mxu0 0.0
    %v667 = vand.u32 %v442, 4294901760
    %v668 = vsub.f32 %v442, %v667
    %669 = vmatpush1.msra.mxu0 %v668
    %670 = vmatprep.subr.mxu0 0.0
    %v671 = vand.u32 %v443, 4294901760
    %v672 = vsub.f32 %v443, %v671
    %673 = vmatpush1.msra.mxu0 %v672
    %674 = vmatprep.subr.mxu0 0.0
    %v675 = vand.u32 %v444, 4294901760
    %v676 = vsub.f32 %v444, %v675
    %677 = vmatpush1.msra.mxu0 %v676
    %678 = vmatprep.subr.mxu0 0.0
    %v679 = vand.u32 %v445, 4294901760
    %v680 = vsub.f32 %v445, %v679
    %681 = vmatpush1.msra.mxu0 %v680
    %682 = vmatprep.subr.mxu0 0.0
    %v683 = vand.u32 %v446, 4294901760
    %v684 = vsub.f32 %v446, %v683
    %685 = vmatpush1.msra.mxu0 %v684
    %686 = vmatprep.subr.mxu0 0.0
    %v687 = vand.u32 %v447, 4294901760
    %v688 = vsub.f32 %v447, %v687
    %689 = vmatpush1.msra.mxu0 %v688
    %690 = vmatprep.subr.mxu0 0.0
    %v691 = vand.u32 %v448, 4294901760
    %v692 = vsub.f32 %v448, %v691
    %693 = vmatpush1.msra.mxu0 %v692
    %694 = vmatprep.subr.mxu0 0.0
    %v695 = vand.u32 %v449, 4294901760
    %v696 = vsub.f32 %v449, %v695
    %697 = vmatpush1.msra.mxu0 %v696
    %698 = vmatprep.subr.mxu0 0.0
    %699 = vmatpush1.msra.mxu0 0.0
    %700 = vmatprep.subr.mxu0 0.0
    %701 = vmatpush1.msra.mxu0 0.0
    %702 = vmatprep.subr.mxu0 0.0
    %703 = vmatpush1.msra.mxu0 0.0
    %704 = vmatprep.subr.mxu0 0.0
    %705 = vmatpush1.msra.mxu0 0.0
    %706 = vmatprep.subr.mxu0 0.0
    %707 = vmatpush1.msra.mxu0 0.0
    %708 = vmatprep.subr.mxu0 0.0
    %709 = vmatpush1.msra.mxu0 0.0
    %710 = vmatprep.subr.mxu0 0.0
    %711 = vmatpush1.msra.mxu0 0.0
    %712 = vmatprep.subr.mxu0 0.0
    %713 = vmatpush1.msra.mxu0 0.0
    %714 = vmatprep.subr.mxu0 0.0
    %715 = vmatpush1.msra.mxu0 0.0
    %716 = vmatprep.subr.mxu0 0.0
    %717 = vmatpush1.msra.mxu0 0.0
    %718 = vmatprep.subr.mxu0 0.0
    %719 = vmatpush1.msra.mxu0 0.0
    %720 = vmatprep.subr.mxu0 0.0
    %721 = vmatpush1.msra.mxu0 0.0
    %722 = vmatprep.subr.mxu0 0.0
    %723 = vmatpush1.msra.mxu0 0.0
    %724 = vmatprep.subr.mxu0 0.0
    %725 = vmatpush1.msra.mxu0 0.0
    %726 = vmatprep.subr.mxu0 0.0
    %727 = vmatpush1.msra.mxu0 0.0
    %728 = vmatprep.subr.mxu0 0.0
    %729 = vmatpush1.msra.mxu0 0.0
    %730 = vmatprep.subr.mxu0 0.0
    %731 = vmatpush1.msra.mxu0 0.0
    %732 = vmatprep.subr.mxu0 0.0
    %733 = vmatpush1.msra.mxu0 0.0
    %734 = vmatprep.subr.mxu0 0.0
    %735 = vmatpush1.msra.mxu0 0.0
    %736 = vmatprep.subr.mxu0 0.0
    %737 = vmatpush1.msra.mxu0 0.0
    %738 = vmatprep.subr.mxu0 0.0
    %739 = vmatpush1.msra.mxu0 0.0
    %740 = vmatprep.subr.mxu0 0.0
    %741 = vmatpush1.msra.mxu0 0.0
    %742 = vmatprep.subr.mxu0 0.0
    %743 = vmatpush1.msra.mxu0 0.0
    %744 = vmatprep.subr.mxu0 0.0
    %745 = vmatpush1.msra.mxu0 0.0
    %746 = vmatprep.mubr.f32.mxu0 0.0
    %v747 = vand.u32 %v451, 4294901760
    %v748 = vsub.f32 %v451, %v747
    %749 = vmatmul.mubr.f32.gmra.mrb[0].mxu0 %v748
    %v750 = vpop.f32.mrb[0].mxu0
    %v751 = vadd.f32 %v657, %v750
    %v752 = vpop.f32.mrb[0].mxu0
    %753 = vmatprep.mubr.f32.mxu0 0.0
    %v754 = vand.u32 %v454, 4294901760
    %v755 = vsub.f32 %v454, %v754
    %756 = vmatmul.mubr.f32.gmra.mrb[0].mxu0 %v755
    %v757 = vpop.f32.mrb[0].mxu0
    %v758 = vadd.f32 %v663, %v757
    %v759 = vpop.f32.mrb[0].mxu0
    %760 = vdwg.mxu0
    %761 = vmatprep.subr.mxu0 0.0
    %v762 = vand.u32 %v442, 4294901760
    %763 = vmatpush1.msra.mxu0 %v762
    %764 = vmatprep.subr.mxu0 0.0
    %v765 = vand.u32 %v443, 4294901760
    %766 = vmatpush1.msra.mxu0 %v765
    %767 = vmatprep.subr.mxu0 0.0
    %v768 = vand.u32 %v444, 4294901760
    %769 = vmatpush1.msra.mxu0 %v768
    %770 = vmatprep.subr.mxu0 0.0
    %v771 = vand.u32 %v445, 4294901760
    %772 = vmatpush1.msra.mxu0 %v771
    %773 = vmatprep.subr.mxu0 0.0
    %v774 = vand.u32 %v446, 4294901760
    %775 = vmatpush1.msra.mxu0 %v774
    %776 = vmatprep.subr.mxu0 0.0
    %v777 = vand.u32 %v447, 4294901760
    %778 = vmatpush1.msra.mxu0 %v777
    %779 = vmatprep.subr.mxu0 0.0
    %v780 = vand.u32 %v448, 4294901760
    %781 = vmatpush1.msra.mxu0 %v780
    %782 = vmatprep.subr.mxu0 0.0
    %v783 = vand.u32 %v449, 4294901760
    %784 = vmatpush1.msra.mxu0 %v783
    %785 = vmatprep.subr.mxu0 0.0
    %786 = vmatpush1.msra.mxu0 0.0
    %787 = vmatprep.subr.mxu0 0.0
    %788 = vmatpush1.msra.mxu0 0.0
    %789 = vmatprep.subr.mxu0 0.0
    %790 = vmatpush1.msra.mxu0 0.0
    %791 = vmatprep.subr.mxu0 0.0
    %792 = vmatpush1.msra.mxu0 0.0
    %793 = vmatprep.subr.mxu0 0.0
    %794 = vmatpush1.msra.mxu0 0.0
    %795 = vmatprep.subr.mxu0 0.0
    %796 = vmatpush1.msra.mxu0 0.0
    %797 = vmatprep.subr.mxu0 0.0
    %798 = vmatpush1.msra.mxu0 0.0
    %799 = vmatprep.subr.mxu0 0.0
    %800 = vmatpush1.msra.mxu0 0.0
    %801 = vmatprep.subr.mxu0 0.0
    %802 = vmatpush1.msra.mxu0 0.0
    %803 = vmatprep.subr.mxu0 0.0
    %804 = vmatpush1.msra.mxu0 0.0
    %805 = vmatprep.subr.mxu0 0.0
    %806 = vmatpush1.msra.mxu0 0.0
    %807 = vmatprep.subr.mxu0 0.0
    %808 = vmatpush1.msra.mxu0 0.0
    %809 = vmatprep.subr.mxu0 0.0
    %810 = vmatpush1.msra.mxu0 0.0
    %811 = vmatprep.subr.mxu0 0.0
    %812 = vmatpush1.msra.mxu0 0.0
    %813 = vmatprep.subr.mxu0 0.0
    %814 = vmatpush1.msra.mxu0 0.0
    %815 = vmatprep.subr.mxu0 0.0
    %816 = vmatpush1.msra.mxu0 0.0
    %817 = vmatprep.subr.mxu0 0.0
    %818 = vmatpush1.msra.mxu0 0.0
    %819 = vmatprep.subr.mxu0 0.0
    %820 = vmatpush1.msra.mxu0 0.0
    %821 = vmatprep.subr.mxu0 0.0
    %822 = vmatpush1.msra.mxu0 0.0
    %823 = vmatprep.subr.mxu0 0.0
    %824 = vmatpush1.msra.mxu0 0.0
    %825 = vmatprep.subr.mxu0 0.0
    %826 = vmatpush1.msra.mxu0 0.0
    %827 = vmatprep.subr.mxu0 0.0
    %828 = vmatpush1.msra.mxu0 0.0
    %829 = vmatprep.subr.mxu0 0.0
    %830 = vmatpush1.msra.mxu0 0.0
    %831 = vmatprep.subr.mxu0 0.0
    %832 = vmatpush1.msra.mxu0 0.0
    %833 = vmatprep.mubr.f32.mxu0 0.0
    %v834 = vand.u32 %v451, 4294901760
    %v835 = vsub.f32 %v451, %v834
    %v836 = vand.u32 %v835, 4294901760
    %837 = vmatmul.mubr.f32.gmra.mrb[0].mxu0 %v836
    %v838 = vpop.f32.mrb[0].mxu0
    %v839 = vadd.f32 %v751, %v838
    %v840 = vpop.f32.mrb[0].mxu0
    %841 = vmatprep.mubr.f32.mxu0 0.0
    %v842 = vand.u32 %v454, 4294901760
    %v843 = vsub.f32 %v454, %v842
    %v844 = vand.u32 %v843, 4294901760
    %845 = vmatmul.mubr.f32.gmra.mrb[0].mxu0 %v844
    %v846 = vpop.f32.mrb[0].mxu0
    %v847 = vadd.f32 %v758, %v846
    %v848 = vpop.f32.mrb[0].mxu0
    %849 = vdwg.mxu0
    %850 = vmatprep.subr.mxu0 0.0
    %v851 = vand.u32 %v442, 4294901760
    %v852 = vsub.f32 %v442, %v851
    %v853 = vand.u32 %v852, 4294901760
    %854 = vmatpush1.msra.mxu0 %v853
    %855 = vmatprep.subr.mxu0 0.0
    %v856 = vand.u32 %v443, 4294901760
    %v857 = vsub.f32 %v443, %v856
    %v858 = vand.u32 %v857, 4294901760
    %859 = vmatpush1.msra.mxu0 %v858
    %860 = vmatprep.subr.mxu0 0.0
    %v861 = vand.u32 %v444, 4294901760
    %v862 = vsub.f32 %v444, %v861
    %v863 = vand.u32 %v862, 4294901760
    %864 = vmatpush1.msra.mxu0 %v863
    %865 = vmatprep.subr.mxu0 0.0
    %v866 = vand.u32 %v445, 4294901760
    %v867 = vsub.f32 %v445, %v866
    %v868 = vand.u32 %v867, 4294901760
    %869 = vmatpush1.msra.mxu0 %v868
    %870 = vmatprep.subr.mxu0 0.0
    %v871 = vand.u32 %v446, 4294901760
    %v872 = vsub.f32 %v446, %v871
    %v873 = vand.u32 %v872, 4294901760
    %874 = vmatpush1.msra.mxu0 %v873
    %875 = vmatprep.subr.mxu0 0.0
    %v876 = vand.u32 %v447, 4294901760
    %v877 = vsub.f32 %v447, %v876
    %v878 = vand.u32 %v877, 4294901760
    %879 = vmatpush1.msra.mxu0 %v878
    %880 = vmatprep.subr.mxu0 0.0
    %v881 = vand.u32 %v448, 4294901760
    %v882 = vsub.f32 %v448, %v881
    %v883 = vand.u32 %v882, 4294901760
    %884 = vmatpush1.msra.mxu0 %v883
    %885 = vmatprep.subr.mxu0 0.0
    %v886 = vand.u32 %v449, 4294901760
    %v887 = vsub.f32 %v449, %v886
    %v888 = vand.u32 %v887, 4294901760
    %889 = vmatpush1.msra.mxu0 %v888
    %890 = vmatprep.subr.mxu0 0.0
    %891 = vmatpush1.msra.mxu0 0.0
    %892 = vmatprep.subr.mxu0 0.0
    %893 = vmatpush1.msra.mxu0 0.0
    %894 = vmatprep.subr.mxu0 0.0
    %895 = vmatpush1.msra.mxu0 0.0
    %896 = vmatprep.subr.mxu0 0.0
    %897 = vmatpush1.msra.mxu0 0.0
    %898 = vmatprep.subr.mxu0 0.0
    %899 = vmatpush1.msra.mxu0 0.0
    %900 = vmatprep.subr.mxu0 0.0
    %901 = vmatpush1.msra.mxu0 0.0
    %902 = vmatprep.subr.mxu0 0.0
    %903 = vmatpush1.msra.mxu0 0.0
    %904 = vmatprep.subr.mxu0 0.0
    %905 = vmatpush1.msra.mxu0 0.0
    %906 = vmatprep.subr.mxu0 0.0
    %907 = vmatpush1.msra.mxu0 0.0
    %908 = vmatprep.subr.mxu0 0.0
    %909 = vmatpush1.msra.mxu0 0.0
    %910 = vmatprep.subr.mxu0 0.0
    %911 = vmatpush1.msra.mxu0 0.0
    %912 = vmatprep.subr.mxu0 0.0
    %913 = vmatpush1.msra.mxu0 0.0
    %914 = vmatprep.subr.mxu0 0.0
    %915 = vmatpush1.msra.mxu0 0.0
    %916 = vmatprep.subr.mxu0 0.0
    %917 = vmatpush1.msra.mxu0 0.0
    %918 = vmatprep.subr.mxu0 0.0
    %919 = vmatpush1.msra.mxu0 0.0
    %920 = vmatprep.subr.mxu0 0.0
    %921 = vmatpush1.msra.mxu0 0.0
    %922 = vmatprep.subr.mxu0 0.0
    %923 = vmatpush1.msra.mxu0 0.0
    %924 = vmatprep.subr.mxu0 0.0
    %925 = vmatpush1.msra.mxu0 0.0
    %926 = vmatprep.subr.mxu0 0.0
    %927 = vmatpush1.msra.mxu0 0.0
    %928 = vmatprep.subr.mxu0 0.0
    %929 = vmatpush1.msra.mxu0 0.0
    %930 = vmatprep.subr.mxu0 0.0
    %931 = vmatpush1.msra.mxu0 0.0
    %932 = vmatprep.subr.mxu0 0.0
    %933 = vmatpush1.msra.mxu0 0.0
    %934 = vmatprep.subr.mxu0 0.0
    %935 = vmatpush1.msra.mxu0 0.0
    %936 = vmatprep.subr.mxu0 0.0
    %937 = vmatpush1.msra.mxu0 0.0
    %938 = vmatprep.mubr.f32.mxu0 0.0
    %v939 = vand.u32 %v451, 4294901760
    %940 = vmatmul.mubr.f32.gmra.mrb[0].mxu0 %v939
    %v941 = vpop.f32.mrb[0].mxu0
    %v942 = vadd.f32 %v839, %v941
    %v943 = vpop.f32.mrb[0].mxu0
    %944 = vmatprep.mubr.f32.mxu0 0.0
    %v945 = vand.u32 %v454, 4294901760
    %946 = vmatmul.mubr.f32.gmra.mrb[0].mxu0 %v945
    %v947 = vpop.f32.mrb[0].mxu0
    %v948 = vadd.f32 %v847, %v947
    %v949 = vpop.f32.mrb[0].mxu0
    %950 = vdwg.mxu0
    %951 = vmatprep.subr.mxu0 0.0
    %v952 = vand.u32 %v442, 4294901760
    %953 = vmatpush1.msra.mxu0 %v952
    %954 = vmatprep.subr.mxu0 0.0
    %v955 = vand.u32 %v443, 4294901760
    %956 = vmatpush1.msra.mxu0 %v955
    %957 = vmatprep.subr.mxu0 0.0
    %v958 = vand.u32 %v444, 4294901760
    %959 = vmatpush1.msra.mxu0 %v958
    %960 = vmatprep.subr.mxu0 0.0
    %v961 = vand.u32 %v445, 4294901760
    %962 = vmatpush1.msra.mxu0 %v961
    %963 = vmatprep.subr.mxu0 0.0
    %v964 = vand.u32 %v446, 4294901760
    %965 = vmatpush1.msra.mxu0 %v964
    %966 = vmatprep.subr.mxu0 0.0
    %v967 = vand.u32 %v447, 4294901760
    %968 = vmatpush1.msra.mxu0 %v967
    %969 = vmatprep.subr.mxu0 0.0
    %v970 = vand.u32 %v448, 4294901760
    %971 = vmatpush1.msra.mxu0 %v970
    %972 = vmatprep.subr.mxu0 0.0
    %v973 = vand.u32 %v449, 4294901760
    %974 = vmatpush1.msra.mxu0 %v973
    %975 = vmatprep.subr.mxu0 0.0
    %976 = vmatpush1.msra.mxu0 0.0
    %977 = vmatprep.subr.mxu0 0.0
    %978 = vmatpush1.msra.mxu0 0.0
    %979 = vmatprep.subr.mxu0 0.0
    %980 = vmatpush1.msra.mxu0 0.0
    %981 = vmatprep.subr.mxu0 0.0
    %982 = vmatpush1.msra.mxu0 0.0
    %983 = vmatprep.subr.mxu0 0.0
    %984 = vmatpush1.msra.mxu0 0.0
    %985 = vmatprep.subr.mxu0 0.0
    %986 = vmatpush1.msra.mxu0 0.0
    %987 = vmatprep.subr.mxu0 0.0
    %988 = vmatpush1.msra.mxu0 0.0
    %989 = vmatprep.subr.mxu0 0.0
    %990 = vmatpush1.msra.mxu0 0.0
    %991 = vmatprep.subr.mxu0 0.0
    %992 = vmatpush1.msra.mxu0 0.0
    %993 = vmatprep.subr.mxu0 0.0
    %994 = vmatpush1.msra.mxu0 0.0
    %995 = vmatprep.subr.mxu0 0.0
    %996 = vmatpush1.msra.mxu0 0.0
    %997 = vmatprep.subr.mxu0 0.0
    %998 = vmatpush1.msra.mxu0 0.0
    %999 = vmatprep.subr.mxu0 0.0
    %1000 = vmatpush1.msra.mxu0 0.0
    %1001 = vmatprep.subr.mxu0 0.0
    %1002 = vmatpush1.msra.mxu0 0.0
    %1003 = vmatprep.subr.mxu0 0.0
    %1004 = vmatpush1.msra.mxu0 0.0
    %1005 = vmatprep.subr.mxu0 0.0
    %1006 = vmatpush1.msra.mxu0 0.0
    %1007 = vmatprep.subr.mxu0 0.0
    %1008 = vmatpush1.msra.mxu0 0.0
    %1009 = vmatprep.subr.mxu0 0.0
    %1010 = vmatpush1.msra.mxu0 0.0
    %1011 = vmatprep.subr.mxu0 0.0
    %1012 = vmatpush1.msra.mxu0 0.0
    %1013 = vmatprep.subr.mxu0 0.0
    %1014 = vmatpush1.msra.mxu0 0.0
    %1015 = vmatprep.subr.mxu0 0.0
    %1016 = vmatpush1.msra.mxu0 0.0
    %1017 = vmatprep.subr.mxu0 0.0
    %1018 = vmatpush1.msra.mxu0 0.0
    %1019 = vmatprep.subr.mxu0 0.0
    %1020 = vmatpush1.msra.mxu0 0.0
    %1021 = vmatprep.subr.mxu0 0.0
    %1022 = vmatpush1.msra.mxu0 0.0
    %1023 = vmatprep.mubr.f32.mxu0 0.0
    %v1024 = vand.u32 %v451, 4294901760
    %1025 = vmatmul.mubr.f32.gmra.mrb[0].mxu0 %v1024
    %v1026 = vpop.f32.mrb[0].mxu0
    %v1027 = vadd.f32 %v942, %v1026
    %v1028 = vpop.f32.mrb[0].mxu0
    %1029 = vmatprep.mubr.f32.mxu0 0.0
    %v1030 = vand.u32 %v454, 4294901760
    %1031 = vmatmul.mubr.f32.gmra.mrb[0].mxu0 %v1030
    %v1032 = vpop.f32.mrb[0].mxu0
    %v1033 = vadd.f32 %v948, %v1032
    %v1034 = vpop.f32.mrb[0].mxu0
    %1035 = vdwg.mxu0
    %v1037 = vsel %vm400, %v422, 0
    %v1040 = vsel %vm400, %v424, 0
    %1042 = vmatprep.subr.mxu0 0.0
    %v1043 = vand.u32 %v442, 4294901760
    %1044 = vmatpush1.msra.mxu0 %v1043
    %1045 = vmatprep.subr.mxu0 0.0
    %v1046 = vand.u32 %v443, 4294901760
    %1047 = vmatpush1.msra.mxu0 %v1046
    %1048 = vmatprep.subr.mxu0 0.0
    %v1049 = vand.u32 %v444, 4294901760
    %1050 = vmatpush1.msra.mxu0 %v1049
    %1051 = vmatprep.subr.mxu0 0.0
    %v1052 = vand.u32 %v445, 4294901760
    %1053 = vmatpush1.msra.mxu0 %v1052
    %1054 = vmatprep.subr.mxu0 0.0
    %v1055 = vand.u32 %v446, 4294901760
    %1056 = vmatpush1.msra.mxu0 %v1055
    %1057 = vmatprep.subr.mxu0 0.0
    %v1058 = vand.u32 %v447, 4294901760
    %1059 = vmatpush1.msra.mxu0 %v1058
    %1060 = vmatprep.subr.mxu0 0.0
    %v1061 = vand.u32 %v448, 4294901760
    %1062 = vmatpush1.msra.mxu0 %v1061
    %1063 = vmatprep.subr.mxu0 0.0
    %v1064 = vand.u32 %v449, 4294901760
    %1065 = vmatpush1.msra.mxu0 %v1064
    %1066 = vmatprep.subr.mxu0 0.0
    %1067 = vmatpush1.msra.mxu0 0.0
    %1068 = vmatprep.subr.mxu0 0.0
    %1069 = vmatpush1.msra.mxu0 0.0
    %1070 = vmatprep.subr.mxu0 0.0
    %1071 = vmatpush1.msra.mxu0 0.0
    %1072 = vmatprep.subr.mxu0 0.0
    %1073 = vmatpush1.msra.mxu0 0.0
    %1074 = vmatprep.subr.mxu0 0.0
    %1075 = vmatpush1.msra.mxu0 0.0
    %1076 = vmatprep.subr.mxu0 0.0
    %1077 = vmatpush1.msra.mxu0 0.0
    %1078 = vmatprep.subr.mxu0 0.0
    %1079 = vmatpush1.msra.mxu0 0.0
    %1080 = vmatprep.subr.mxu0 0.0
    %1081 = vmatpush1.msra.mxu0 0.0
    %1082 = vmatprep.subr.mxu0 0.0
    %1083 = vmatpush1.msra.mxu0 0.0
    %1084 = vmatprep.subr.mxu0 0.0
    %1085 = vmatpush1.msra.mxu0 0.0
    %1086 = vmatprep.subr.mxu0 0.0
    %1087 = vmatpush1.msra.mxu0 0.0
    %1088 = vmatprep.subr.mxu0 0.0
    %1089 = vmatpush1.msra.mxu0 0.0
    %1090 = vmatprep.subr.mxu0 0.0
    %1091 = vmatpush1.msra.mxu0 0.0
    %1092 = vmatprep.subr.mxu0 0.0
    %1093 = vmatpush1.msra.mxu0 0.0
    %1094 = vmatprep.subr.mxu0 0.0
    %1095 = vmatpush1.msra.mxu0 0.0
    %1096 = vmatprep.subr.mxu0 0.0
    %1097 = vmatpush1.msra.mxu0 0.0
    %1098 = vmatprep.subr.mxu0 0.0
    %1099 = vmatpush1.msra.mxu0 0.0
    %1100 = vmatprep.subr.mxu0 0.0
    %1101 = vmatpush1.msra.mxu0 0.0
    %1102 = vmatprep.subr.mxu0 0.0
    %1103 = vmatpush1.msra.mxu0 0.0
    %1104 = vmatprep.subr.mxu0 0.0
    %1105 = vmatpush1.msra.mxu0 0.0
    %1106 = vmatprep.subr.mxu0 0.0
    %1107 = vmatpush1.msra.mxu0 0.0
    %1108 = vmatprep.subr.mxu0 0.0
    %1109 = vmatpush1.msra.mxu0 0.0
    %1110 = vmatprep.subr.mxu0 0.0
    %1111 = vmatpush1.msra.mxu0 0.0
    %1112 = vmatprep.subr.mxu0 0.0
    %1113 = vmatpush1.msra.mxu0 0.0
    %1114 = vmatprep.mubr.f32.mxu0 0.0
    %v1115 = vand.u32 %v1037, 4294901760
    %v1116 = vsub.f32 %v1037, %v1115
    %v1117 = vand.u32 %v1116, 4294901760
    %v1118 = vsub.f32 %v1116, %v1117
    %v1119 = vand.u32 %v1118, 4294901760
    %1120 = vmatmul.mubr.f32.gmra.mrb[0].mxu0 %v1119
    %v1121 = vpop.f32.mrb[0].mxu0
    %v1122 = vadd.f32 0.0, %v1121
    %v1123 = vpop.f32.mrb[0].mxu0
    %1124 = vmatprep.mubr.f32.mxu0 0.0
    %v1125 = vand.u32 %v1040, 4294901760
    %v1126 = vsub.f32 %v1040, %v1125
    %v1127 = vand.u32 %v1126, 4294901760
    %v1128 = vsub.f32 %v1126, %v1127
    %v1129 = vand.u32 %v1128, 4294901760
    %1130 = vmatmul.mubr.f32.gmra.mrb[0].mxu0 %v1129
    %v1131 = vpop.f32.mrb[0].mxu0
    %v1132 = vadd.f32 0.0, %v1131
    %v1133 = vpop.f32.mrb[0].mxu0
    %1134 = vdwg.mxu0
    %1135 = vmatprep.subr.mxu0 0.0
    %v1136 = vand.u32 %v442, 4294901760
    %v1137 = vsub.f32 %v442, %v1136
    %v1138 = vand.u32 %v1137, 4294901760
    %v1139 = vsub.f32 %v1137, %v1138
    %v1140 = vand.u32 %v1139, 4294901760
    %1141 = vmatpush1.msra.mxu0 %v1140
    %1142 = vmatprep.subr.mxu0 0.0
    %v1143 = vand.u32 %v443, 4294901760
    %v1144 = vsub.f32 %v443, %v1143
    %v1145 = vand.u32 %v1144, 4294901760
    %v1146 = vsub.f32 %v1144, %v1145
    %v1147 = vand.u32 %v1146, 4294901760
    %1148 = vmatpush1.msra.mxu0 %v1147
    %1149 = vmatprep.subr.mxu0 0.0
    %v1150 = vand.u32 %v444, 4294901760
    %v1151 = vsub.f32 %v444, %v1150
    %v1152 = vand.u32 %v1151, 4294901760
    %v1153 = vsub.f32 %v1151, %v1152
    %v1154 = vand.u32 %v1153, 4294901760
    %1155 = vmatpush1.msra.mxu0 %v1154
    %1156 = vmatprep.subr.mxu0 0.0
    %v1157 = vand.u32 %v445, 4294901760
    %v1158 = vsub.f32 %v445, %v1157
    %v1159 = vand.u32 %v1158, 4294901760
    %v1160 = vsub.f32 %v1158, %v1159
    %v1161 = vand.u32 %v1160, 4294901760
    %1162 = vmatpush1.msra.mxu0 %v1161
    %1163 = vmatprep.subr.mxu0 0.0
    %v1164 = vand.u32 %v446, 4294901760
    %v1165 = vsub.f32 %v446, %v1164
    %v1166 = vand.u32 %v1165, 4294901760
    %v1167 = vsub.f32 %v1165, %v1166
    %v1168 = vand.u32 %v1167, 4294901760
    %1169 = vmatpush1.msra.mxu0 %v1168
    %1170 = vmatprep.subr.mxu0 0.0
    %v1171 = vand.u32 %v447, 4294901760
    %v1172 = vsub.f32 %v447, %v1171
    %v1173 = vand.u32 %v1172, 4294901760
    %v1174 = vsub.f32 %v1172, %v1173
    %v1175 = vand.u32 %v1174, 4294901760
    %1176 = vmatpush1.msra.mxu0 %v1175
    %1177 = vmatprep.subr.mxu0 0.0
    %v1178 = vand.u32 %v448, 4294901760
    %v1179 = vsub.f32 %v448, %v1178
    %v1180 = vand.u32 %v1179, 4294901760
    %v1181 = vsub.f32 %v1179, %v1180
    %v1182 = vand.u32 %v1181, 4294901760
    %1183 = vmatpush1.msra.mxu0 %v1182
    %1184 = vmatprep.subr.mxu0 0.0
    %v1185 = vand.u32 %v449, 4294901760
    %v1186 = vsub.f32 %v449, %v1185
    %v1187 = vand.u32 %v1186, 4294901760
    %v1188 = vsub.f32 %v1186, %v1187
    %v1189 = vand.u32 %v1188, 4294901760
    %1190 = vmatpush1.msra.mxu0 %v1189
    %1191 = vmatprep.subr.mxu0 0.0
    %1192 = vmatpush1.msra.mxu0 0.0
    %1193 = vmatprep.subr.mxu0 0.0
    %1194 = vmatpush1.msra.mxu0 0.0
    %1195 = vmatprep.subr.mxu0 0.0
    %1196 = vmatpush1.msra.mxu0 0.0
    %1197 = vmatprep.subr.mxu0 0.0
    %1198 = vmatpush1.msra.mxu0 0.0
    %1199 = vmatprep.subr.mxu0 0.0
    %1200 = vmatpush1.msra.mxu0 0.0
    %1201 = vmatprep.subr.mxu0 0.0
    %1202 = vmatpush1.msra.mxu0 0.0
    %1203 = vmatprep.subr.mxu0 0.0
    %1204 = vmatpush1.msra.mxu0 0.0
    %1205 = vmatprep.subr.mxu0 0.0
    %1206 = vmatpush1.msra.mxu0 0.0
    %1207 = vmatprep.subr.mxu0 0.0
    %1208 = vmatpush1.msra.mxu0 0.0
    %1209 = vmatprep.subr.mxu0 0.0
    %1210 = vmatpush1.msra.mxu0 0.0
    %1211 = vmatprep.subr.mxu0 0.0
    %1212 = vmatpush1.msra.mxu0 0.0
    %1213 = vmatprep.subr.mxu0 0.0
    %1214 = vmatpush1.msra.mxu0 0.0
    %1215 = vmatprep.subr.mxu0 0.0
    %1216 = vmatpush1.msra.mxu0 0.0
    %1217 = vmatprep.subr.mxu0 0.0
    %1218 = vmatpush1.msra.mxu0 0.0
    %1219 = vmatprep.subr.mxu0 0.0
    %1220 = vmatpush1.msra.mxu0 0.0
    %1221 = vmatprep.subr.mxu0 0.0
    %1222 = vmatpush1.msra.mxu0 0.0
    %1223 = vmatprep.subr.mxu0 0.0
    %1224 = vmatpush1.msra.mxu0 0.0
    %1225 = vmatprep.subr.mxu0 0.0
    %1226 = vmatpush1.msra.mxu0 0.0
    %1227 = vmatprep.subr.mxu0 0.0
    %1228 = vmatpush1.msra.mxu0 0.0
    %1229 = vmatprep.subr.mxu0 0.0
    %1230 = vmatpush1.msra.mxu0 0.0
    %1231 = vmatprep.subr.mxu0 0.0
    %1232 = vmatpush1.msra.mxu0 0.0
    %1233 = vmatprep.subr.mxu0 0.0
    %1234 = vmatpush1.msra.mxu0 0.0
    %1235 = vmatprep.subr.mxu0 0.0
    %1236 = vmatpush1.msra.mxu0 0.0
    %1237 = vmatprep.subr.mxu0 0.0
    %1238 = vmatpush1.msra.mxu0 0.0
    %1239 = vmatprep.mubr.f32.mxu0 0.0
    %v1240 = vand.u32 %v1037, 4294901760
    %1241 = vmatmul.mubr.f32.gmra.mrb[0].mxu0 %v1240
    %v1242 = vpop.f32.mrb[0].mxu0
    %v1243 = vadd.f32 %v1122, %v1242
    %v1244 = vpop.f32.mrb[0].mxu0
    %1245 = vmatprep.mubr.f32.mxu0 0.0
    %v1246 = vand.u32 %v1040, 4294901760
    %1247 = vmatmul.mubr.f32.gmra.mrb[0].mxu0 %v1246
    %v1248 = vpop.f32.mrb[0].mxu0
    %v1249 = vadd.f32 %v1132, %v1248
    %v1250 = vpop.f32.mrb[0].mxu0
    %1251 = vdwg.mxu0
    %1252 = vmatprep.subr.mxu0 0.0
    %v1253 = vand.u32 %v442, 4294901760
    %v1254 = vsub.f32 %v442, %v1253
    %1255 = vmatpush1.msra.mxu0 %v1254
    %1256 = vmatprep.subr.mxu0 0.0
    %v1257 = vand.u32 %v443, 4294901760
    %v1258 = vsub.f32 %v443, %v1257
    %1259 = vmatpush1.msra.mxu0 %v1258
    %1260 = vmatprep.subr.mxu0 0.0
    %v1261 = vand.u32 %v444, 4294901760
    %v1262 = vsub.f32 %v444, %v1261
    %1263 = vmatpush1.msra.mxu0 %v1262
    %1264 = vmatprep.subr.mxu0 0.0
    %v1265 = vand.u32 %v445, 4294901760
    %v1266 = vsub.f32 %v445, %v1265
    %1267 = vmatpush1.msra.mxu0 %v1266
    %1268 = vmatprep.subr.mxu0 0.0
    %v1269 = vand.u32 %v446, 4294901760
    %v1270 = vsub.f32 %v446, %v1269
    %1271 = vmatpush1.msra.mxu0 %v1270
    %1272 = vmatprep.subr.mxu0 0.0
    %v1273 = vand.u32 %v447, 4294901760
    %v1274 = vsub.f32 %v447, %v1273
    %1275 = vmatpush1.msra.mxu0 %v1274
    %1276 = vmatprep.subr.mxu0 0.0
    %v1277 = vand.u32 %v448, 4294901760
    %v1278 = vsub.f32 %v448, %v1277
    %1279 = vmatpush1.msra.mxu0 %v1278
    %1280 = vmatprep.subr.mxu0 0.0
    %v1281 = vand.u32 %v449, 4294901760
    %v1282 = vsub.f32 %v449, %v1281
    %1283 = vmatpush1.msra.mxu0 %v1282
    %1284 = vmatprep.subr.mxu0 0.0
    %1285 = vmatpush1.msra.mxu0 0.0
    %1286 = vmatprep.subr.mxu0 0.0
    %1287 = vmatpush1.msra.mxu0 0.0
    %1288 = vmatprep.subr.mxu0 0.0
    %1289 = vmatpush1.msra.mxu0 0.0
    %1290 = vmatprep.subr.mxu0 0.0
    %1291 = vmatpush1.msra.mxu0 0.0
    %1292 = vmatprep.subr.mxu0 0.0
    %1293 = vmatpush1.msra.mxu0 0.0
    %1294 = vmatprep.subr.mxu0 0.0
    %1295 = vmatpush1.msra.mxu0 0.0
    %1296 = vmatprep.subr.mxu0 0.0
    %1297 = vmatpush1.msra.mxu0 0.0
    %1298 = vmatprep.subr.mxu0 0.0
    %1299 = vmatpush1.msra.mxu0 0.0
    %1300 = vmatprep.subr.mxu0 0.0
    %1301 = vmatpush1.msra.mxu0 0.0
    %1302 = vmatprep.subr.mxu0 0.0
    %1303 = vmatpush1.msra.mxu0 0.0
    %1304 = vmatprep.subr.mxu0 0.0
    %1305 = vmatpush1.msra.mxu0 0.0
    %1306 = vmatprep.subr.mxu0 0.0
    %1307 = vmatpush1.msra.mxu0 0.0
    %1308 = vmatprep.subr.mxu0 0.0
    %1309 = vmatpush1.msra.mxu0 0.0
    %1310 = vmatprep.subr.mxu0 0.0
    %1311 = vmatpush1.msra.mxu0 0.0
    %1312 = vmatprep.subr.mxu0 0.0
    %1313 = vmatpush1.msra.mxu0 0.0
    %1314 = vmatprep.subr.mxu0 0.0
    %1315 = vmatpush1.msra.mxu0 0.0
    %1316 = vmatprep.subr.mxu0 0.0
    %1317 = vmatpush1.msra.mxu0 0.0
    %1318 = vmatprep.subr.mxu0 0.0
    %1319 = vmatpush1.msra.mxu0 0.0
    %1320 = vmatprep.subr.mxu0 0.0
    %1321 = vmatpush1.msra.mxu0 0.0
    %1322 = vmatprep.subr.mxu0 0.0
    %1323 = vmatpush1.msra.mxu0 0.0
    %1324 = vmatprep.subr.mxu0 0.0
    %1325 = vmatpush1.msra.mxu0 0.0
    %1326 = vmatprep.subr.mxu0 0.0
    %1327 = vmatpush1.msra.mxu0 0.0
    %1328 = vmatprep.subr.mxu0 0.0
    %1329 = vmatpush1.msra.mxu0 0.0
    %1330 = vmatprep.subr.mxu0 0.0
    %1331 = vmatpush1.msra.mxu0 0.0
    %1332 = vmatprep.mubr.f32.mxu0 0.0
    %v1333 = vand.u32 %v1037, 4294901760
    %v1334 = vsub.f32 %v1037, %v1333
    %1335 = vmatmul.mubr.f32.gmra.mrb[0].mxu0 %v1334
    %v1336 = vpop.f32.mrb[0].mxu0
    %v1337 = vadd.f32 %v1243, %v1336
    %v1338 = vpop.f32.mrb[0].mxu0
    %1339 = vmatprep.mubr.f32.mxu0 0.0
    %v1340 = vand.u32 %v1040, 4294901760
    %v1341 = vsub.f32 %v1040, %v1340
    %1342 = vmatmul.mubr.f32.gmra.mrb[0].mxu0 %v1341
    %v1343 = vpop.f32.mrb[0].mxu0
    %v1344 = vadd.f32 %v1249, %v1343
    %v1345 = vpop.f32.mrb[0].mxu0
    %1346 = vdwg.mxu0
    %1347 = vmatprep.subr.mxu0 0.0
    %v1348 = vand.u32 %v442, 4294901760
    %1349 = vmatpush1.msra.mxu0 %v1348
    %1350 = vmatprep.subr.mxu0 0.0
    %v1351 = vand.u32 %v443, 4294901760
    %1352 = vmatpush1.msra.mxu0 %v1351
    %1353 = vmatprep.subr.mxu0 0.0
    %v1354 = vand.u32 %v444, 4294901760
    %1355 = vmatpush1.msra.mxu0 %v1354
    %1356 = vmatprep.subr.mxu0 0.0
    %v1357 = vand.u32 %v445, 4294901760
    %1358 = vmatpush1.msra.mxu0 %v1357
    %1359 = vmatprep.subr.mxu0 0.0
    %v1360 = vand.u32 %v446, 4294901760
    %1361 = vmatpush1.msra.mxu0 %v1360
    %1362 = vmatprep.subr.mxu0 0.0
    %v1363 = vand.u32 %v447, 4294901760
    %1364 = vmatpush1.msra.mxu0 %v1363
    %1365 = vmatprep.subr.mxu0 0.0
    %v1366 = vand.u32 %v448, 4294901760
    %1367 = vmatpush1.msra.mxu0 %v1366
    %1368 = vmatprep.subr.mxu0 0.0
    %v1369 = vand.u32 %v449, 4294901760
    %1370 = vmatpush1.msra.mxu0 %v1369
    %1371 = vmatprep.subr.mxu0 0.0
    %1372 = vmatpush1.msra.mxu0 0.0
    %1373 = vmatprep.subr.mxu0 0.0
    %1374 = vmatpush1.msra.mxu0 0.0
    %1375 = vmatprep.subr.mxu0 0.0
    %1376 = vmatpush1.msra.mxu0 0.0
    %1377 = vmatprep.subr.mxu0 0.0
    %1378 = vmatpush1.msra.mxu0 0.0
    %1379 = vmatprep.subr.mxu0 0.0
    %1380 = vmatpush1.msra.mxu0 0.0
    %1381 = vmatprep.subr.mxu0 0.0
    %1382 = vmatpush1.msra.mxu0 0.0
    %1383 = vmatprep.subr.mxu0 0.0
    %1384 = vmatpush1.msra.mxu0 0.0
    %1385 = vmatprep.subr.mxu0 0.0
    %1386 = vmatpush1.msra.mxu0 0.0
    %1387 = vmatprep.subr.mxu0 0.0
    %1388 = vmatpush1.msra.mxu0 0.0
    %1389 = vmatprep.subr.mxu0 0.0
    %1390 = vmatpush1.msra.mxu0 0.0
    %1391 = vmatprep.subr.mxu0 0.0
    %1392 = vmatpush1.msra.mxu0 0.0
    %1393 = vmatprep.subr.mxu0 0.0
    %1394 = vmatpush1.msra.mxu0 0.0
    %1395 = vmatprep.subr.mxu0 0.0
    %1396 = vmatpush1.msra.mxu0 0.0
    %1397 = vmatprep.subr.mxu0 0.0
    %1398 = vmatpush1.msra.mxu0 0.0
    %1399 = vmatprep.subr.mxu0 0.0
    %1400 = vmatpush1.msra.mxu0 0.0
    %1401 = vmatprep.subr.mxu0 0.0
    %1402 = vmatpush1.msra.mxu0 0.0
    %1403 = vmatprep.subr.mxu0 0.0
    %1404 = vmatpush1.msra.mxu0 0.0
    %1405 = vmatprep.subr.mxu0 0.0
    %1406 = vmatpush1.msra.mxu0 0.0
    %1407 = vmatprep.subr.mxu0 0.0
    %1408 = vmatpush1.msra.mxu0 0.0
    %1409 = vmatprep.subr.mxu0 0.0
    %1410 = vmatpush1.msra.mxu0 0.0
    %1411 = vmatprep.subr.mxu0 0.0
    %1412 = vmatpush1.msra.mxu0 0.0
    %1413 = vmatprep.subr.mxu0 0.0
    %1414 = vmatpush1.msra.mxu0 0.0
    %1415 = vmatprep.subr.mxu0 0.0
    %1416 = vmatpush1.msra.mxu0 0.0
    %1417 = vmatprep.subr.mxu0 0.0
    %1418 = vmatpush1.msra.mxu0 0.0
    %1419 = vmatprep.mubr.f32.mxu0 0.0
    %v1420 = vand.u32 %v1037, 4294901760
    %v1421 = vsub.f32 %v1037, %v1420
    %v1422 = vand.u32 %v1421, 4294901760
    %1423 = vmatmul.mubr.f32.gmra.mrb[0].mxu0 %v1422
    %v1424 = vpop.f32.mrb[0].mxu0
    %v1425 = vadd.f32 %v1337, %v1424
    %v1426 = vpop.f32.mrb[0].mxu0
    %1427 = vmatprep.mubr.f32.mxu0 0.0
    %v1428 = vand.u32 %v1040, 4294901760
    %v1429 = vsub.f32 %v1040, %v1428
    %v1430 = vand.u32 %v1429, 4294901760
    %1431 = vmatmul.mubr.f32.gmra.mrb[0].mxu0 %v1430
    %v1432 = vpop.f32.mrb[0].mxu0
    %v1433 = vadd.f32 %v1344, %v1432
    %v1434 = vpop.f32.mrb[0].mxu0
    %1435 = vdwg.mxu0
    %1436 = vmatprep.subr.mxu0 0.0
    %v1437 = vand.u32 %v442, 4294901760
    %v1438 = vsub.f32 %v442, %v1437
    %v1439 = vand.u32 %v1438, 4294901760
    %1440 = vmatpush1.msra.mxu0 %v1439
    %1441 = vmatprep.subr.mxu0 0.0
    %v1442 = vand.u32 %v443, 4294901760
    %v1443 = vsub.f32 %v443, %v1442
    %v1444 = vand.u32 %v1443, 4294901760
    %1445 = vmatpush1.msra.mxu0 %v1444
    %1446 = vmatprep.subr.mxu0 0.0
    %v1447 = vand.u32 %v444, 4294901760
    %v1448 = vsub.f32 %v444, %v1447
    %v1449 = vand.u32 %v1448, 4294901760
    %1450 = vmatpush1.msra.mxu0 %v1449
    %1451 = vmatprep.subr.mxu0 0.0
    %v1452 = vand.u32 %v445, 4294901760
    %v1453 = vsub.f32 %v445, %v1452
    %v1454 = vand.u32 %v1453, 4294901760
    %1455 = vmatpush1.msra.mxu0 %v1454
    %1456 = vmatprep.subr.mxu0 0.0
    %v1457 = vand.u32 %v446, 4294901760
    %v1458 = vsub.f32 %v446, %v1457
    %v1459 = vand.u32 %v1458, 4294901760
    %1460 = vmatpush1.msra.mxu0 %v1459
    %1461 = vmatprep.subr.mxu0 0.0
    %v1462 = vand.u32 %v447, 4294901760
    %v1463 = vsub.f32 %v447, %v1462
    %v1464 = vand.u32 %v1463, 4294901760
    %1465 = vmatpush1.msra.mxu0 %v1464
    %1466 = vmatprep.subr.mxu0 0.0
    %v1467 = vand.u32 %v448, 4294901760
    %v1468 = vsub.f32 %v448, %v1467
    %v1469 = vand.u32 %v1468, 4294901760
    %1470 = vmatpush1.msra.mxu0 %v1469
    %1471 = vmatprep.subr.mxu0 0.0
    %v1472 = vand.u32 %v449, 4294901760
    %v1473 = vsub.f32 %v449, %v1472
    %v1474 = vand.u32 %v1473, 4294901760
    %1475 = vmatpush1.msra.mxu0 %v1474
    %1476 = vmatprep.subr.mxu0 0.0
    %1477 = vmatpush1.msra.mxu0 0.0
    %1478 = vmatprep.subr.mxu0 0.0
    %1479 = vmatpush1.msra.mxu0 0.0
    %1480 = vmatprep.subr.mxu0 0.0
    %1481 = vmatpush1.msra.mxu0 0.0
    %1482 = vmatprep.subr.mxu0 0.0
    %1483 = vmatpush1.msra.mxu0 0.0
    %1484 = vmatprep.subr.mxu0 0.0
    %1485 = vmatpush1.msra.mxu0 0.0
    %1486 = vmatprep.subr.mxu0 0.0
    %1487 = vmatpush1.msra.mxu0 0.0
    %1488 = vmatprep.subr.mxu0 0.0
    %1489 = vmatpush1.msra.mxu0 0.0
    %1490 = vmatprep.subr.mxu0 0.0
    %1491 = vmatpush1.msra.mxu0 0.0
    %1492 = vmatprep.subr.mxu0 0.0
    %1493 = vmatpush1.msra.mxu0 0.0
    %1494 = vmatprep.subr.mxu0 0.0
    %1495 = vmatpush1.msra.mxu0 0.0
    %1496 = vmatprep.subr.mxu0 0.0
    %1497 = vmatpush1.msra.mxu0 0.0
    %1498 = vmatprep.subr.mxu0 0.0
    %1499 = vmatpush1.msra.mxu0 0.0
    %1500 = vmatprep.subr.mxu0 0.0
    %1501 = vmatpush1.msra.mxu0 0.0
    %1502 = vmatprep.subr.mxu0 0.0
    %1503 = vmatpush1.msra.mxu0 0.0
    %1504 = vmatprep.subr.mxu0 0.0
    %1505 = vmatpush1.msra.mxu0 0.0
    %1506 = vmatprep.subr.mxu0 0.0
    %1507 = vmatpush1.msra.mxu0 0.0
    %1508 = vmatprep.subr.mxu0 0.0
    %1509 = vmatpush1.msra.mxu0 0.0
    %1510 = vmatprep.subr.mxu0 0.0
    %1511 = vmatpush1.msra.mxu0 0.0
    %1512 = vmatprep.subr.mxu0 0.0
    %1513 = vmatpush1.msra.mxu0 0.0
    %1514 = vmatprep.subr.mxu0 0.0
    %1515 = vmatpush1.msra.mxu0 0.0
    %1516 = vmatprep.subr.mxu0 0.0
    %1517 = vmatpush1.msra.mxu0 0.0
    %1518 = vmatprep.subr.mxu0 0.0
    %1519 = vmatpush1.msra.mxu0 0.0
    %1520 = vmatprep.subr.mxu0 0.0
    %1521 = vmatpush1.msra.mxu0 0.0
    %1522 = vmatprep.subr.mxu0 0.0
    %1523 = vmatpush1.msra.mxu0 0.0
    %1524 = vmatprep.mubr.f32.mxu0 0.0
    %v1525 = vand.u32 %v1037, 4294901760
    %1526 = vmatmul.mubr.f32.gmra.mrb[0].mxu0 %v1525
    %v1527 = vpop.f32.mrb[0].mxu0
    %v1528 = vadd.f32 %v1425, %v1527
    %v1529 = vpop.f32.mrb[0].mxu0
    %1530 = vmatprep.mubr.f32.mxu0 0.0
    %v1531 = vand.u32 %v1040, 4294901760
    %1532 = vmatmul.mubr.f32.gmra.mrb[0].mxu0 %v1531
    %v1533 = vpop.f32.mrb[0].mxu0
    %v1534 = vadd.f32 %v1433, %v1533
    %v1535 = vpop.f32.mrb[0].mxu0
    %1536 = vdwg.mxu0
    %1537 = vmatprep.subr.mxu0 0.0
    %v1538 = vand.u32 %v442, 4294901760
    %1539 = vmatpush1.msra.mxu0 %v1538
    %1540 = vmatprep.subr.mxu0 0.0
    %v1541 = vand.u32 %v443, 4294901760
    %1542 = vmatpush1.msra.mxu0 %v1541
    %1543 = vmatprep.subr.mxu0 0.0
    %v1544 = vand.u32 %v444, 4294901760
    %1545 = vmatpush1.msra.mxu0 %v1544
    %1546 = vmatprep.subr.mxu0 0.0
    %v1547 = vand.u32 %v445, 4294901760
    %1548 = vmatpush1.msra.mxu0 %v1547
    %1549 = vmatprep.subr.mxu0 0.0
    %v1550 = vand.u32 %v446, 4294901760
    %1551 = vmatpush1.msra.mxu0 %v1550
    %1552 = vmatprep.subr.mxu0 0.0
    %v1553 = vand.u32 %v447, 4294901760
    %1554 = vmatpush1.msra.mxu0 %v1553
    %1555 = vmatprep.subr.mxu0 0.0
    %v1556 = vand.u32 %v448, 4294901760
    %1557 = vmatpush1.msra.mxu0 %v1556
    %1558 = vmatprep.subr.mxu0 0.0
    %v1559 = vand.u32 %v449, 4294901760
    %1560 = vmatpush1.msra.mxu0 %v1559
    %1561 = vmatprep.subr.mxu0 0.0
    %1562 = vmatpush1.msra.mxu0 0.0
    %1563 = vmatprep.subr.mxu0 0.0
    %1564 = vmatpush1.msra.mxu0 0.0
    %1565 = vmatprep.subr.mxu0 0.0
    %1566 = vmatpush1.msra.mxu0 0.0
    %1567 = vmatprep.subr.mxu0 0.0
    %1568 = vmatpush1.msra.mxu0 0.0
    %1569 = vmatprep.subr.mxu0 0.0
    %1570 = vmatpush1.msra.mxu0 0.0
    %1571 = vmatprep.subr.mxu0 0.0
    %1572 = vmatpush1.msra.mxu0 0.0
    %1573 = vmatprep.subr.mxu0 0.0
    %1574 = vmatpush1.msra.mxu0 0.0
    %1575 = vmatprep.subr.mxu0 0.0
    %1576 = vmatpush1.msra.mxu0 0.0
    %1577 = vmatprep.subr.mxu0 0.0
    %1578 = vmatpush1.msra.mxu0 0.0
    %1579 = vmatprep.subr.mxu0 0.0
    %1580 = vmatpush1.msra.mxu0 0.0
    %1581 = vmatprep.subr.mxu0 0.0
    %1582 = vmatpush1.msra.mxu0 0.0
    %1583 = vmatprep.subr.mxu0 0.0
    %1584 = vmatpush1.msra.mxu0 0.0
    %1585 = vmatprep.subr.mxu0 0.0
    %1586 = vmatpush1.msra.mxu0 0.0
    %1587 = vmatprep.subr.mxu0 0.0
    %1588 = vmatpush1.msra.mxu0 0.0
    %1589 = vmatprep.subr.mxu0 0.0
    %1590 = vmatpush1.msra.mxu0 0.0
    %1591 = vmatprep.subr.mxu0 0.0
    %1592 = vmatpush1.msra.mxu0 0.0
    %1593 = vmatprep.subr.mxu0 0.0
    %1594 = vmatpush1.msra.mxu0 0.0
    %1595 = vmatprep.subr.mxu0 0.0
    %1596 = vmatpush1.msra.mxu0 0.0
    %1597 = vmatprep.subr.mxu0 0.0
    %1598 = vmatpush1.msra.mxu0 0.0
    %1599 = vmatprep.subr.mxu0 0.0
    %1600 = vmatpush1.msra.mxu0 0.0
    %1601 = vmatprep.subr.mxu0 0.0
    %1602 = vmatpush1.msra.mxu0 0.0
    %1603 = vmatprep.subr.mxu0 0.0
    %1604 = vmatpush1.msra.mxu0 0.0
    %1605 = vmatprep.subr.mxu0 0.0
    %1606 = vmatpush1.msra.mxu0 0.0
    %1607 = vmatprep.subr.mxu0 0.0
    %1608 = vmatpush1.msra.mxu0 0.0
    %1609 = vmatprep.mubr.f32.mxu0 0.0
    %v1610 = vand.u32 %v1037, 4294901760
    %1611 = vmatmul.mubr.f32.gmra.mrb[0].mxu0 %v1610
    %v1612 = vpop.f32.mrb[0].mxu0
    %v1613 = vadd.f32 %v1528, %v1612
    %v1614 = vpop.f32.mrb[0].mxu0
    %1615 = vmatprep.mubr.f32.mxu0 0.0
    %v1616 = vand.u32 %v1040, 4294901760
    %1617 = vmatmul.mubr.f32.gmra.mrb[0].mxu0 %v1616
    %v1618 = vpop.f32.mrb[0].mxu0
    %v1619 = vadd.f32 %v1534, %v1618
    %v1620 = vpop.f32.mrb[0].mxu0
    %1621 = vdwg.mxu0
    %v1622 = vrcp.pop %v1027
    %v1623 = vrcp.pop %v1033
    %v1624 = vmul.f32 %v416, %v1622
    %v1625 = vmul.f32 %v418, %v1623
    %v1626 = vrcp.pop %v1613
    %v1627 = vrcp.pop %v1619
    %v1628 = vmul.f32 %v422, %v1626
    %v1629 = vmul.f32 %v424, %v1627
    %1631 = vset.pattern.permute.xlu0 48
    %1632 = vperm.xlu0 %1631, %v173
    %v1633 = vpop.permute.xlu0 %1632
    %1636 = vset.pattern.permute.xlu0 48
    %1637 = vperm.xlu0 %1636, %v175
    %v1638 = vpop.permute.xlu0 %1637
    %v1640 = vmul.f32 %v1633, %v1628
    %v1641 = vmul.f32 %v1638, %v1629
    %v1642 = vsub.f32 1.0, %v173
    %v1643 = vsub.f32 1.0, %v175
    %1645 = vset.pattern.permute.xlu0 48
    %1646 = vperm.xlu0 %1645, %v1642
    %v1647 = vpop.permute.xlu0 %1646
    %1650 = vset.pattern.permute.xlu0 48
    %1651 = vperm.xlu0 %1650, %v1643
    %v1652 = vpop.permute.xlu0 %1651
    %v1654 = vmul.f32 %v1647, %v1624
    %v1655 = vmul.f32 %v1652, %v1625
    %v1656 = vadd.f32 %v1640, %v1654
    %v1657 = vadd.f32 %v1641, %v1655
    %v1659 = vsel %vm400, %v1656, 0
    %v1662 = vsel %vm400, %v1657, 0
    %1664 = vmatprep.subr.mxu0 0.0
    %1665 = vmatpush1.msra.mxu0 %v259
    %1666 = vmatprep.subr.mxu0 0.0
    %1667 = vmatpush1.msra.mxu0 %v260
    %1668 = vmatprep.subr.mxu0 0.0
    %1669 = vmatpush1.msra.mxu0 %v261
    %1670 = vmatprep.subr.mxu0 0.0
    %1671 = vmatpush1.msra.mxu0 %v262
    %1672 = vmatprep.subr.mxu0 0.0
    %1673 = vmatpush1.msra.mxu0 %v263
    %1674 = vmatprep.subr.mxu0 0.0
    %1675 = vmatpush1.msra.mxu0 %v264
    %1676 = vmatprep.subr.mxu0 0.0
    %1677 = vmatpush1.msra.mxu0 %v265
    %1678 = vmatprep.subr.mxu0 0.0
    %1679 = vmatpush1.msra.mxu0 %v266
    %1680 = vmatprep.subr.mxu0 0.0
    %1681 = vmatpush1.msra.mxu0 0.0
    %1682 = vmatprep.subr.mxu0 0.0
    %1683 = vmatpush1.msra.mxu0 0.0
    %1684 = vmatprep.subr.mxu0 0.0
    %1685 = vmatpush1.msra.mxu0 0.0
    %1686 = vmatprep.subr.mxu0 0.0
    %1687 = vmatpush1.msra.mxu0 0.0
    %1688 = vmatprep.subr.mxu0 0.0
    %1689 = vmatpush1.msra.mxu0 0.0
    %1690 = vmatprep.subr.mxu0 0.0
    %1691 = vmatpush1.msra.mxu0 0.0
    %1692 = vmatprep.subr.mxu0 0.0
    %1693 = vmatpush1.msra.mxu0 0.0
    %1694 = vmatprep.subr.mxu0 0.0
    %1695 = vmatpush1.msra.mxu0 0.0
    %1696 = vmatprep.subr.mxu0 0.0
    %1697 = vmatpush1.msra.mxu0 0.0
    %1698 = vmatprep.subr.mxu0 0.0
    %1699 = vmatpush1.msra.mxu0 0.0
    %1700 = vmatprep.subr.mxu0 0.0
    %1701 = vmatpush1.msra.mxu0 0.0
    %1702 = vmatprep.subr.mxu0 0.0
    %1703 = vmatpush1.msra.mxu0 0.0
    %1704 = vmatprep.subr.mxu0 0.0
    %1705 = vmatpush1.msra.mxu0 0.0
    %1706 = vmatprep.subr.mxu0 0.0
    %1707 = vmatpush1.msra.mxu0 0.0
    %1708 = vmatprep.subr.mxu0 0.0
    %1709 = vmatpush1.msra.mxu0 0.0
    %1710 = vmatprep.subr.mxu0 0.0
    %1711 = vmatpush1.msra.mxu0 0.0
    %1712 = vmatprep.subr.mxu0 0.0
    %1713 = vmatpush1.msra.mxu0 0.0
    %1714 = vmatprep.subr.mxu0 0.0
    %1715 = vmatpush1.msra.mxu0 0.0
    %1716 = vmatprep.subr.mxu0 0.0
    %1717 = vmatpush1.msra.mxu0 0.0
    %1718 = vmatprep.subr.mxu0 0.0
    %1719 = vmatpush1.msra.mxu0 0.0
    %1720 = vmatprep.subr.mxu0 0.0
    %1721 = vmatpush1.msra.mxu0 0.0
    %1722 = vmatprep.subr.mxu0 0.0
    %1723 = vmatpush1.msra.mxu0 0.0
    %1724 = vmatprep.subr.mxu0 0.0
    %1725 = vmatpush1.msra.mxu0 0.0
    %1726 = vmatprep.subr.mxu0 0.0
    %1727 = vmatpush1.msra.mxu0 0.0
    %1728 = vmatprep.mubr.f32.mxu0 0.0
    %1729 = vmatmul.mubr.f32.gmra.mrb[0].mxu0 %v1659
    %v1730 = vpop.f32.mrb[0].mxu0
    %v1731 = vadd.f32 0.0, %v1730
    %v1732 = vpop.f32.mrb[0].mxu0
    %1733 = vmatprep.mubr.f32.mxu0 0.0
    %1734 = vmatmul.mubr.f32.gmra.mrb[0].mxu0 %v1662
    %v1735 = vpop.f32.mrb[0].mxu0
    %v1736 = vadd.f32 0.0, %v1735
    %v1737 = vpop.f32.mrb[0].mxu0
    %1738 = vdwg.mxu0
    %v1739 = vld [vmem:[%s2] sm:$0xff]
    %v1740 = vld [vmem:[%s2 + $0x8] sm:$0xff]
    %v1741 = vld [vmem:[%s2 + $0x10] sm:$0xff]
    %v1742 = vld [vmem:[%s2 + $0x18] sm:$0xff]
    %v1744 = vsel %vm23, %v1731, 0
    %v1747 = vsel %vm23, %v1736, 0
    %1749 = vmatprep.subr.mxu0 0.0
    %1750 = vmatpush1.msra.mxu0 %v1739
    %1751 = vmatprep.subr.mxu0 0.0
    %1752 = vmatpush1.msra.mxu0 %v1740
    %1753 = vmatprep.subr.mxu0 0.0
    %1754 = vmatpush1.msra.mxu0 %v1741
    %1755 = vmatprep.subr.mxu0 0.0
    %1756 = vmatpush1.msra.mxu0 %v1742
    %1757 = vmatprep.subr.mxu0 0.0
    %1758 = vmatpush1.msra.mxu0 0.0
    %1759 = vmatprep.subr.mxu0 0.0
    %1760 = vmatpush1.msra.mxu0 0.0
    %1761 = vmatprep.subr.mxu0 0.0
    %1762 = vmatpush1.msra.mxu0 0.0
    %1763 = vmatprep.subr.mxu0 0.0
    %1764 = vmatpush1.msra.mxu0 0.0
    %1765 = vmatprep.subr.mxu0 0.0
    %1766 = vmatpush1.msra.mxu0 0.0
    %1767 = vmatprep.subr.mxu0 0.0
    %1768 = vmatpush1.msra.mxu0 0.0
    %1769 = vmatprep.subr.mxu0 0.0
    %1770 = vmatpush1.msra.mxu0 0.0
    %1771 = vmatprep.subr.mxu0 0.0
    %1772 = vmatpush1.msra.mxu0 0.0
    %1773 = vmatprep.subr.mxu0 0.0
    %1774 = vmatpush1.msra.mxu0 0.0
    %1775 = vmatprep.subr.mxu0 0.0
    %1776 = vmatpush1.msra.mxu0 0.0
    %1777 = vmatprep.subr.mxu0 0.0
    %1778 = vmatpush1.msra.mxu0 0.0
    %1779 = vmatprep.subr.mxu0 0.0
    %1780 = vmatpush1.msra.mxu0 0.0
    %1781 = vmatprep.subr.mxu0 0.0
    %1782 = vmatpush1.msra.mxu0 0.0
    %1783 = vmatprep.subr.mxu0 0.0
    %1784 = vmatpush1.msra.mxu0 0.0
    %1785 = vmatprep.subr.mxu0 0.0
    %1786 = vmatpush1.msra.mxu0 0.0
    %1787 = vmatprep.subr.mxu0 0.0
    %1788 = vmatpush1.msra.mxu0 0.0
    %1789 = vmatprep.subr.mxu0 0.0
    %1790 = vmatpush1.msra.mxu0 0.0
    %1791 = vmatprep.subr.mxu0 0.0
    %1792 = vmatpush1.msra.mxu0 0.0
    %1793 = vmatprep.subr.mxu0 0.0
    %1794 = vmatpush1.msra.mxu0 0.0
    %1795 = vmatprep.subr.mxu0 0.0
    %1796 = vmatpush1.msra.mxu0 0.0
    %1797 = vmatprep.subr.mxu0 0.0
    %1798 = vmatpush1.msra.mxu0 0.0
    %1799 = vmatprep.subr.mxu0 0.0
    %1800 = vmatpush1.msra.mxu0 0.0
    %1801 = vmatprep.subr.mxu0 0.0
    %1802 = vmatpush1.msra.mxu0 0.0
    %1803 = vmatprep.subr.mxu0 0.0
    %1804 = vmatpush1.msra.mxu0 0.0
    %1805 = vmatprep.subr.mxu0 0.0
    %1806 = vmatpush1.msra.mxu0 0.0
    %1807 = vmatprep.subr.mxu0 0.0
    %1808 = vmatpush1.msra.mxu0 0.0
    %1809 = vmatprep.subr.mxu0 0.0
    %1810 = vmatpush1.msra.mxu0 0.0
    %1811 = vmatprep.subr.mxu0 0.0
    %1812 = vmatpush1.msra.mxu0 0.0
    %1813 = vmatprep.mubr.f32.mxu0 0.0
    %1814 = vmatmul.mubr.f32.gmra.mrb[0].mxu0 %v1744
    %v1815 = vpop.f32.mrb[0].mxu0
    %v1816 = vadd.f32 0.0, %v1815
    %v1817 = vpop.f32.mrb[0].mxu0
    %1818 = vmatprep.mubr.f32.mxu0 0.0
    %1819 = vmatmul.mubr.f32.gmra.mrb[0].mxu0 %v1747
    %v1820 = vpop.f32.mrb[0].mxu0
    %v1821 = vadd.f32 0.0, %v1820
    %v1822 = vpop.f32.mrb[0].mxu0
    %1823 = vdwg.mxu0
    %1824 = vst.msk [vmem:[#allocation2] sm:$0xff] %vm23, %v1816
    %1825 = vst.msk [vmem:[#allocation2 + $0x8] sm:$0xff] %vm23, %v1821
    %v1826 = vmax.f32 %v173, 1e-05
    %v1827 = vmax.f32 %v175, 1e-05
    %v1828 = vmin.f32 %v1826, 0.99999
    %v1829 = vmin.f32 %v1827, 0.99999
    %v1830 = vmul.f32 %v173, %v1642
    %v1831 = vmul.f32 %v175, %v1643
    %vm1832 = vcmask 400768
    %v1833 = vsel %vm1832, %v1830, 0.0
    %v1834 = vsel %vm1832, %v1831, 0.0
    %v1835 = vadd.f32 %v1833, %v1834
    %v1836 = vrot.slane %v1835, 4
    %v1837 = vadd.f32 %v1835, %v1836
    %v1838 = vrot.slane %v1837, 2
    %v1839 = vadd.f32 %v1837, %v1838
    %v1840 = vrot.slane %v1839, 1
    %v1841 = vadd.f32 %v1839, %v1840
    %v1842 = vlog2.pop %v1828
    %v1843 = vmul.f32 %v1842, 0.6931472
    %v1844 = vlog2.pop %v1829
    %v1845 = vmul.f32 %v1844, 0.6931472
    %v1846 = vmul.f32 %v173, %v1843
    %v1847 = vmul.f32 %v175, %v1845
    %v1848 = vsub.f32 1.0, %v1828
    %v1849 = vsub.f32 1.0, %v1829
    %v1850 = vlog2.pop %v1848
    %v1851 = vmul.f32 %v1850, 0.6931472
    %v1852 = vlog2.pop %v1849
    %v1853 = vmul.f32 %v1852, 0.6931472
    %v1854 = vmul.f32 %v1642, %v1851
    %v1855 = vmul.f32 %v1643, %v1853
    %v1856 = vadd.f32 %v1846, %v1854
    %v1857 = vadd.f32 %v1847, %v1855
    %v1858 = vsel %vm1832, %v1856, 0.0
    %v1859 = vsel %vm1832, %v1857, 0.0
    %v1860 = vadd.f32 %v1858, %v1859
    %v1861 = vrot.slane %v1860, 4
    %v1862 = vadd.f32 %v1860, %v1861
    %v1863 = vrot.slane %v1862, 2
    %v1864 = vadd.f32 %v1862, %v1863
    %v1865 = vrot.slane %v1864, 1
    %v1866 = vadd.f32 %v1864, %v1865
    %v1867 = vsel %vm1832, %v173, 0.0
    %v1868 = vsel %vm1832, %v175, 0.0
    %v1869 = vadd.f32 %v1867, %v1868
    %v1870 = vrot.slane %v1869, 4
    %v1871 = vadd.f32 %v1869, %v1870
    %v1872 = vrot.slane %v1871, 2
    %v1873 = vadd.f32 %v1871, %v1872
    %v1874 = vrot.slane %v1873, 1
    %v1875 = vadd.f32 %v1873, %v1874
    %v1876 = vmul.f32 %v1841, -0.1
    %v1877 = vmul.f32 %v1866, 0.01
    %v1878 = vsub.f32 %v1876, %v1877
    %v1879 = vmul.f32 %v1875, 0.1
    %v1880 = vadd.f32 %v1878, %v1879
    %v1881 = vmul.f32 %v1880, 0.0625
    %1883 = vrot.lane.b32.xlu0 %v1881, 80
    %v1884 = vpop.permute.xlu0 %1883
    %vm1886 = vcmask 0
    %1887 = vst.msk [vmem:[#allocation4] sm:$0x1] %vm1886, %v1884
    // Predicated region
    $region18: #{gated_duo_attention_forward.1} parent=1 // pred_check
      _
    $region19: #{gated_duo_attention_forward.1} parent=1 // pred_check_branch
      %1889 = sbr.rel (0) target = $region21
    $region20: #{gated_duo_attention_forward.1} parent=1 // pred_region
      %s1891 = ssub.s32 256, 256
      %1892 = vsyncadd [#allocation3], %s1891
      %s1893 = sshll.u32 [#allocation2], 4
      %s1894 = int_to_ptr.vmem [resolvable:$true] %s1893
      %1899 = dma.vmem_to_hbm [thread:$0]  %s1894, 256, %s4, [#allocation3], 128, 128, 8
    $region21: #{gated_duo_attention_forward.1} parent=1 // pred_fallthru
      _
    // Predicated region
    $region22: #{gated_duo_attention_forward.1} parent=1 // pred_check
      _
    $region23: #{gated_duo_attention_forward.1} parent=1 // pred_check_branch
      %1901 = sbr.rel (0) target = $region25
    $region24: #{gated_duo_attention_forward.1} parent=1 // pred_region
      %s1903 = ssub.s32 16, 16
      %1904 = vsyncadd [#allocation5], %s1903
      %s1906 = sshll.u32 [#allocation4], 4
      %s1907 = int_to_ptr.vmem [resolvable:$true] %s1906
      %1909 = dma.vmem_to_hbm [thread:$0]  %s1907, 16, %s5, [#allocation5]
    $region25: #{gated_duo_attention_forward.1} parent=1 // pred_fallthru
      _
    // Predicated region
    $region26: #{gated_duo_attention_forward.1} parent=1 // pred_check
      _
    $region27: #{gated_duo_attention_forward.1} parent=1 // pred_check_branch
      %1911 = sbr.rel (0) target = $region29
    $region28: #{gated_duo_attention_forward.1} parent=1 // pred_region
      %1912 = dma.done [#allocation3], 256
    $region29: #{gated_duo_attention_forward.1} parent=1 // pred_fallthru
      _
    // Predicated region
    $region30: #{gated_duo_attention_forward.1} parent=1 // pred_check
      _
    $region31: #{gated_duo_attention_forward.1} parent=1 // pred_check_branch
      %1914 = sbr.rel (0) target = $region33
    $region32: #{gated_duo_attention_forward.1} parent=1 // pred_region
      %1915 = dma.done [#allocation5], 16
    $region33: #{gated_duo_attention_forward.1} parent=1 // pred_fallthru
      _
    %1916 = vsyncpa [#allocation3], 1
    %1917 = vsyncpa [#allocation5], 1

</llo_original>
